<compile_context>
chip_gen: v5e
topology: v5e:2x2
jax: 0.10.0
libtpu: 0.0.40
codegen_flags: <defaults>
</compile_context>

<pallas_src>
import jax
import jax.numpy as jnp
from jax.experimental import pallas as pl
from jax.experimental.pallas import tpu as pltpu


def _critic_kernel(state_ref, action_ref,
                   w1_ref, b1_ref,
                   w2a_ref, w2b_ref, b2_ref,
                   w3t_ref, b3_ref,
                   out_ref):
    eps = 1e-5
    tt, B, S = state_ref.shape
    A = action_ref.shape[-1]
    M = tt * B

    # --- BatchNorm1d: per-step (training-mode) batch stats over axis=1 ------
    x = state_ref[...].astype(jnp.float32)                       # [tt, B, S]
    mean = jnp.mean(x, axis=1, keepdims=True)                    # [tt, 1, S]
    centered = x - mean
    var = jnp.mean(centered * centered, axis=1, keepdims=True)   # biased var
    xn = centered * jax.lax.rsqrt(var + eps)                     # [tt, B, S]

    # Merge (tt, B) -> M rows so the matmuls see an MXU-sized M dimension.
    # (B == 8 keeps this a sublane-aligned leading-dim merge, i.e. a view.)
    xn2 = xn.reshape(M, S).astype(jnp.bfloat16)
    a2 = action_ref[...].reshape(M, A)                           # already bf16

    # --- fc1 + ReLU (bf16 operands, f32 accumulate on MXU) ------------------
    h1 = jnp.dot(xn2, w1_ref[...],
                 preferred_element_type=jnp.float32) + b1_ref[...]
    h1 = jnp.maximum(h1, 0.0)                                    # [M, F1] f32

    # --- fc2 over concat(h1, action): split-weight form + ReLU --------------
    h2 = (jnp.dot(h1.astype(jnp.bfloat16), w2a_ref[...],
                  preferred_element_type=jnp.float32)
          + jnp.dot(a2, w2b_ref[...], preferred_element_type=jnp.float32)
          + b2_ref[...])
    h2 = jnp.maximum(h2, 0.0)                                    # [M, F2] f32

    # --- output linear (N=1): emit a lane-dense [1, M] row directly ---------
    # [1, F2] x [M, F2]^T -> [1, M]  (same rhs-contracted pattern as flash's
    # 'bqd,bkd->bqk'), so the store below is an unmasked, lane-dense vst.
    q_row = jnp.einsum("of,mf->om", w3t_ref[...], h2,
                       preferred_element_type=jnp.float32)       # [1, M]
    out_ref[0] = q_row + b3_ref[0]


def _pick_tt(T, B, target_m=256):
    """Steps fused per block: aim for M = TT*B ~= a full MXU tile (256 covers
    v5e/v6e/v7x), while keeping >= 2 grid blocks so v7x can use both TCs."""
    tt = max(1, target_m // max(B, 1))
    tt = min(tt, T)
    while tt > 1 and pl.cdiv(T, tt) < 2:
        tt = max(1, tt // 2)
    return tt


def critic_forward(states, actions, kp, *, tt=None):
    """states: [T, B, S], actions: [T, B, A] -> [T, B, 1].

    Each of the T slices is one independent Critic.forward(state_t, action_t)
    call (BN batch statistics are per-slice).  TT slices are fused per grid
    block; weights are DMA'd to VMEM once and stay resident across the grid.
    """
    T, B, S = states.shape
    A = actions.shape[-1]
    assert B > 1, "BatchNorm1d in training mode needs batch > 1 (PyTorch raises)."
    F1 = kp["w1"].shape[1]
    F2 = kp["w2a"].shape[1]

    if tt is None:
        tt = _pick_tt(T, B)
    nb = pl.cdiv(T, tt)
    T_pad = nb * tt
    if T_pad != T:
        pad = T_pad - T
        states = jnp.pad(states, ((0, pad), (0, 0), (0, 0)))
        actions = jnp.pad(actions, ((0, pad), (0, 0), (0, 0)))
    M = tt * B

    # Stream activations as bf16 (halves per-step HBM->VMEM traffic); the
    # kernel upcasts to f32 only for the BN statistics.
    states_bf = states.astype(jnp.bfloat16)
    actions_bf = actions.astype(jnp.bfloat16)

    grid_spec = pltpu.PrefetchScalarGridSpec(
        num_scalar_prefetch=0,
        grid=(nb,),
        in_specs=[
            pl.BlockSpec((tt, B, S), lambda t: (t, 0, 0)),   # states  (streamed)
            pl.BlockSpec((tt, B, A), lambda t: (t, 0, 0)),   # actions (streamed)
            pl.BlockSpec((S, F1), lambda t: (0, 0)),         # w1   (resident)
            pl.BlockSpec((1, F1), lambda t: (0, 0)),         # b1   (resident)
            pl.BlockSpec((F1, F2), lambda t: (0, 0)),        # w2a  (resident)
            pl.BlockSpec((A, F2), lambda t: (0, 0)),         # w2b  (resident)
            pl.BlockSpec((1, F2), lambda t: (0, 0)),         # b2   (resident)
            pl.BlockSpec((1, F2), lambda t: (0, 0)),         # w3^T (resident)
            pl.BlockSpec(memory_space=pltpu.MemorySpace.SMEM),  # b3 scalar
        ],
        out_specs=pl.BlockSpec((1, 1, M), lambda t: (t, 0, 0)),
    )

    out = pl.pallas_call(
        _critic_kernel,
        out_shape=jax.ShapeDtypeStruct((nb, 1, M), jnp.float32),
        grid_spec=grid_spec,
        compiler_params=pltpu.CompilerParams(
            dimension_semantics=("parallel",)),   # independent blocks -> both TCs
    )(states_bf, actions_bf,
      kp["w1"], kp["b1"], kp["w2a"], kp["w2b"], kp["b2"], kp["w3t"], kp["b3"])

    # [nb, 1, M] rows are ordered (step-within-block, batch); unpack + trim pad.
    out = out.reshape(T_pad, B)[:T].reshape(T, B, 1)
    return out


def critic_forward_single(state, action, kp):
    """Convenience wrapper matching the original forward(state, action) -> [B, 1]."""
    return critic_forward(state[None], action[None], kp)[0]


# ----------------------------- parameter setup ------------------------------

def _xavier_uniform(key, fan_in, fan_out):
    limit = (6.0 / (fan_in + fan_out)) ** 0.5
    return jax.random.uniform(key, (fan_in, fan_out), jnp.float32, -limit, limit)


def make_params(key, state_dim, action_dim, fc1_units, fc2_units):
    """Raw parameters mirroring the PyTorch module (weights stored as [in, out])."""
    k1, k2, k3 = jax.random.split(key, 3)
    return {
        "gamma": jnp.ones((1, state_dim), jnp.float32),      # bn1.weight
        "beta": jnp.zeros((1, state_dim), jnp.float32),       # bn1.bias
        "w1": _xavier_uniform(k1, state_dim, fc1_units),
        "b1": jnp.full((1, fc1_units), 0.01, jnp.float32),
        "w2": _xavier_uniform(k2, fc1_units + action_dim, fc2_units),
        "b2": jnp.full((1, fc2_units), 0.01, jnp.float32),
        "w3": _xavier_uniform(k3, fc2_units, 1),
        "b3": jnp.full((1, 1), 0.01, jnp.float32),
    }


def prepare_kernel_params(p, fc1_units):
    """Host-side one-time transforms:
       - fold BN affine (gamma, beta) into fc1: (xn*g + b) @ W1 + b1
           == xn @ (g^T * W1) + (b @ W1 + b1)
       - split fc2's weight for the concat-free form
       - cast MXU weight operands to bf16 (f32 accumulate stays in-kernel)
       - store the output weight transposed ([1, F2]) and b3 as an SMEM scalar
    """
    w1_f = p["gamma"].reshape(-1, 1) * p["w1"]                  # [S, F1]
    b1_f = p["b1"] + p["beta"] @ p["w1"]                        # [1, F1]
    return {
        "w1": w1_f.astype(jnp.bfloat16),
        "b1": b1_f.astype(jnp.float32),
        "w2a": p["w2"][:fc1_units, :].astype(jnp.bfloat16),     # applied to relu(fc1)
        "w2b": p["w2"][fc1_units:, :].astype(jnp.bfloat16),     # applied to action
        "b2": p["b2"].astype(jnp.float32),
        "w3t": p["w3"].T.astype(jnp.float32),                   # [1, F2]
        "b3": p["b3"].reshape(-1).astype(jnp.float32),          # (1,) SMEM scalar
    }


# ------------------------------- reference ----------------------------------

def _reference(states, actions, p):
    """Pure-JAX f32 reference of the PyTorch forward (training-mode BN), vmapped
    over T independent calls."""
    def single(state, action):
        eps = 1e-5
        x = state.astype(jnp.float32)
        mean = jnp.mean(x, axis=0, keepdims=True)
        var = jnp.mean((x - mean) ** 2, axis=0, keepdims=True)
        xn = (x - mean) / jnp.sqrt(var + eps) * p["gamma"] + p["beta"]
        h1 = jax.nn.relu(xn @ p["w1"] + p["b1"])
        cat = jnp.concatenate([h1, action.astype(jnp.float32)], axis=1)
        h2 = jax.nn.relu(cat @ p["w2"] + p["b2"])
        return h2 @ p["w3"] + p["b3"]
    return jax.vmap(single)(states, actions)


if __name__ == "__main__":
    # T independent forward calls of batch=8, state_dim=32, action_dim=8,
    # fc1_units=64, fc2_units=32.  T=64 -> two fused blocks of M = 32*8 = 256.
    T, B, S, A, F1, F2 = 64, 8, 32, 8, 64, 32

    key = jax.random.PRNGKey(0)
    k_state, k_action, k_params = jax.random.split(key, 3)
    states = jax.random.normal(k_state, (T, B, S), jnp.float32)
    actions = jax.random.normal(k_action, (T, B, A), jnp.float32)

    raw_params = make_params(k_params, S, A, F1, F2)
    kparams = prepare_kernel_params(raw_params, F1)
    # TODO(synk): BatchNorm1d running_mean/running_var side-effect updates of
    # training mode are not modeled (they do not affect the forward output).

    out = jax.block_until_ready(critic_forward(states, actions, kparams))
    assert out.shape == (T, B, 1), out.shape

    # f32 reference (each of the T slices == one PyTorch forward call).
    ref = _reference(states, actions, raw_params)
    max_err = float(jnp.max(jnp.abs(out - ref)))
    # bf16-streamed inputs + bf16 matmul operands (f32 accumulate) vs pure-f32
    # reference -> small rounding; tolerance sized accordingly.
    assert jnp.allclose(out, ref, atol=1e-1, rtol=5e-2), ("mismatch", max_err)

    print("KERNEL_OK")
</pallas_src>

<mosaic_0001>
module attributes {stable_mosaic.version = 11 : i64} {
  func.func @_critic_kernel(%arg0: i32, %arg1: memref<32x8x32xbf16, #tpu.memory_space<vmem>>, %arg2: memref<32x8x8xbf16, #tpu.memory_space<vmem>>, %arg3: memref<32x64xbf16, #tpu.memory_space<vmem>>, %arg4: memref<1x64xf32, #tpu.memory_space<vmem>>, %arg5: memref<64x32xbf16, #tpu.memory_space<vmem>>, %arg6: memref<8x32xbf16, #tpu.memory_space<vmem>>, %arg7: memref<1x32xf32, #tpu.memory_space<vmem>>, %arg8: memref<1x32xf32, #tpu.memory_space<vmem>>, %arg9: memref<1xf32, #tpu.memory_space<smem>>, %arg10: memref<1x1x256xf32, #tpu.memory_space<vmem>>) attributes {dimension_semantics = [#tpu.dimension_semantics<parallel>], iteration_bounds = array<i64: 2>, scalar_prefetch = 0 : i64, scratch_operands = 0 : i64, tpu.core_type = #tpu.core_type<tc>, window_params = [{transform_indices = @transform_0, window_bounds = array<i64: 32, 8, 32>}, {transform_indices = @transform_1, window_bounds = array<i64: 32, 8, 8>}, {pipeline_mode = #tpu.pipeline_mode<synchronous>, transform_indices = @transform_2, window_bounds = array<i64: 32, 64>}, {pipeline_mode = #tpu.pipeline_mode<synchronous>, transform_indices = @transform_3, window_bounds = array<i64: 1, 64>}, {pipeline_mode = #tpu.pipeline_mode<synchronous>, transform_indices = @transform_4, window_bounds = array<i64: 64, 32>}, {pipeline_mode = #tpu.pipeline_mode<synchronous>, transform_indices = @transform_5, window_bounds = array<i64: 8, 32>}, {pipeline_mode = #tpu.pipeline_mode<synchronous>, transform_indices = @transform_6, window_bounds = array<i64: 1, 32>}, {pipeline_mode = #tpu.pipeline_mode<synchronous>, transform_indices = @transform_7, window_bounds = array<i64: 1, 32>}, {transform_indices = @transform_8, window_bounds = array<i64: 1>}, {transform_indices = @transform_9, window_bounds = array<i64: 1, 1, 256>}]} {
    %c0 = arith.constant 0 : index
    %c0_0 = arith.constant 0 : index
    %c0_1 = arith.constant 0 : index
    %0 = vector.load %arg1[%c0, %c0_0, %c0_1] : memref<32x8x32xbf16, #tpu.memory_space<vmem>>, vector<32x8x32xbf16>
    %1 = arith.extf %0 : vector<32x8x32xbf16> to vector<32x8x32xf32>
    %cst = arith.constant dense<0.000000e+00> : vector<32x32xf32>
    %2 = vector.multi_reduction <add>, %1, %cst [1] : vector<32x8x32xf32> to vector<32x32xf32>
    %3 = vector.shape_cast %2 : vector<32x32xf32> to vector<32x1x32xf32>
    %cst_2 = arith.constant 8.000000e+00 : f32
    %4 = vector.broadcast %cst_2 : f32 to vector<32x1x32xf32>
    %5 = arith.divf %3, %4 : vector<32x1x32xf32>
    %6 = vector.broadcast %5 : vector<32x1x32xf32> to vector<32x8x32xf32>
    %7 = arith.subf %1, %6 : vector<32x8x32xf32>
    %8 = arith.mulf %7, %7 : vector<32x8x32xf32>
    %cst_3 = arith.constant dense<0.000000e+00> : vector<32x32xf32>
    %9 = vector.multi_reduction <add>, %8, %cst_3 [1] : vector<32x8x32xf32> to vector<32x32xf32>
    %10 = vector.shape_cast %9 : vector<32x32xf32> to vector<32x1x32xf32>
    %cst_4 = arith.constant 8.000000e+00 : f32
    %11 = vector.broadcast %cst_4 : f32 to vector<32x1x32xf32>
    %12 = arith.divf %10, %11 : vector<32x1x32xf32>
    %cst_5 = arith.constant 9.99999974E-6 : f32
    %13 = vector.broadcast %cst_5 : f32 to vector<32x1x32xf32>
    %14 = arith.addf %12, %13 : vector<32x1x32xf32>
    %15 = math.rsqrt %14 : vector<32x1x32xf32>
    %16 = vector.broadcast %15 : vector<32x1x32xf32> to vector<32x8x32xf32>
    %17 = arith.mulf %7, %16 : vector<32x8x32xf32>
    %18 = vector.shape_cast %17 : vector<32x8x32xf32> to vector<256x32xf32>
    %19 = arith.truncf %18 : vector<256x32xf32> to vector<256x32xbf16>
    %c0_6 = arith.constant 0 : index
    %c0_7 = arith.constant 0 : index
    %c0_8 = arith.constant 0 : index
    %20 = vector.load %arg2[%c0_6, %c0_7, %c0_8] : memref<32x8x8xbf16, #tpu.memory_space<vmem>>, vector<32x8x8xbf16>
    %21 = vector.shape_cast %20 : vector<32x8x8xbf16> to vector<256x8xbf16>
    %c0_9 = arith.constant 0 : index
    %c0_10 = arith.constant 0 : index
    %22 = vector.load %arg3[%c0_9, %c0_10] : memref<32x64xbf16, #tpu.memory_space<vmem>>, vector<32x64xbf16>
    %cst_11 = arith.constant dense<0.000000e+00> : vector<256x64xf32>
    %23 = tpu.matmul %19, %22, %cst_11 {dimension_numbers = #tpu.dot_dimension_numbers<[1], [0], [0], [1], [0, 0, 1, 1], [], []>} : vector<256x32xbf16>, vector<32x64xbf16>, vector<256x64xf32> -> vector<256x64xf32>
    %c0_12 = arith.constant 0 : index
    %c0_13 = arith.constant 0 : index
    %24 = vector.load %arg4[%c0_12, %c0_13] : memref<1x64xf32, #tpu.memory_space<vmem>>, vector<1x64xf32>
    %25 = vector.broadcast %24 : vector<1x64xf32> to vector<256x64xf32>
    %26 = arith.addf %23, %25 : vector<256x64xf32>
    %cst_14 = arith.constant 0.000000e+00 : f32
    %27 = vector.broadcast %cst_14 : f32 to vector<256x64xf32>
    %28 = arith.maximumf %26, %27 : vector<256x64xf32>
    %29 = arith.truncf %28 : vector<256x64xf32> to vector<256x64xbf16>
    %c0_15 = arith.constant 0 : index
    %c0_16 = arith.constant 0 : index
    %30 = vector.load %arg5[%c0_15, %c0_16] : memref<64x32xbf16, #tpu.memory_space<vmem>>, vector<64x32xbf16>
    %cst_17 = arith.constant dense<0.000000e+00> : vector<256x32xf32>
    %31 = tpu.matmul %29, %30, %cst_17 {dimension_numbers = #tpu.dot_dimension_numbers<[1], [0], [0], [1], [0, 0, 1, 1], [], []>} : vector<256x64xbf16>, vector<64x32xbf16>, vector<256x32xf32> -> vector<256x32xf32>
    %c0_18 = arith.constant 0 : index
    %c0_19 = arith.constant 0 : index
    %32 = vector.load %arg6[%c0_18, %c0_19] : memref<8x32xbf16, #tpu.memory_space<vmem>>, vector<8x32xbf16>
    %cst_20 = arith.constant dense<0.000000e+00> : vector<256x32xf32>
    %33 = tpu.matmul %21, %32, %cst_20 {dimension_numbers = #tpu.dot_dimension_numbers<[1], [0], [0], [1], [0, 0, 1, 1], [], []>} : vector<256x8xbf16>, vector<8x32xbf16>, vector<256x32xf32> -> vector<256x32xf32>
    %34 = arith.addf %31, %33 : vector<256x32xf32>
    %c0_21 = arith.constant 0 : index
    %c0_22 = arith.constant 0 : index
    %35 = vector.load %arg7[%c0_21, %c0_22] : memref<1x32xf32, #tpu.memory_space<vmem>>, vector<1x32xf32>
    %36 = vector.broadcast %35 : vector<1x32xf32> to vector<256x32xf32>
    %37 = arith.addf %34, %36 : vector<256x32xf32>
    %cst_23 = arith.constant 0.000000e+00 : f32
    %38 = vector.broadcast %cst_23 : f32 to vector<256x32xf32>
    %39 = arith.maximumf %37, %38 : vector<256x32xf32>
    %c0_24 = arith.constant 0 : index
    %c0_25 = arith.constant 0 : index
    %40 = vector.load %arg8[%c0_24, %c0_25] : memref<1x32xf32, #tpu.memory_space<vmem>>, vector<1x32xf32>
    "tpu.trace_start"() <{level = 10 : i32, message = "of,mf->om"}> : () -> ()
    %cst_26 = arith.constant dense<0.000000e+00> : vector<1x256xf32>
    %41 = tpu.matmul %40, %39, %cst_26 {dimension_numbers = #tpu.dot_dimension_numbers<[1], [1], [0], [0], [0, 0, 1, 0], [], []>} : vector<1x32xf32>, vector<256x32xf32>, vector<1x256xf32> -> vector<1x256xf32>
    "tpu.trace_stop"() : () -> ()
    %c0_27 = arith.constant 0 : index
    %42 = memref.load %arg9[%c0_27] : memref<1xf32, #tpu.memory_space<smem>>
    %43 = vector.broadcast %42 : f32 to vector<1x256xf32>
    %44 = arith.addf %41, %43 : vector<1x256xf32>
    %c0_28 = arith.constant 0 : index
    %c0_29 = arith.constant 0 : index
    %c0_30 = arith.constant 0 : index
    %45 = vector.load %arg10[%c0_28, %c0_29, %c0_30] : memref<1x1x256xf32, #tpu.memory_space<vmem>>, vector<1x1x256xf32>
    %46 = vector.shape_cast %45 : vector<1x1x256xf32> to vector<1x256xf32>
    %47 = vector.shape_cast %44 : vector<1x256xf32> to vector<1x1x256xf32>
    tpu.vector_store %arg10[%c0_28, %c0_29, %c0_30], %47 {strides = array<i32>} : memref<1x1x256xf32, #tpu.memory_space<vmem>>, vector<1x1x256xf32>,
    return
  }
  func.func @transform_0(%arg0: i32) -> (i32, i32, i32) {
    %c0_i32 = arith.constant 0 : i32
    %c0_i32_0 = arith.constant 0 : i32
    %c0_i32_1 = arith.constant 0 : i32
    return %arg0, %c0_i32, %c0_i32_0 : i32, i32, i32
  }
  func.func @transform_1(%arg0: i32) -> (i32, i32, i32) {
    %c0_i32 = arith.constant 0 : i32
    %c0_i32_0 = arith.constant 0 : i32
    %c0_i32_1 = arith.constant 0 : i32
    return %arg0, %c0_i32, %c0_i32_0 : i32, i32, i32
  }
  func.func @transform_2(%arg0: i32) -> (i32, i32) {
    %c0_i32 = arith.constant 0 : i32
    %c0_i32_0 = arith.constant 0 : i32
    %c0_i32_1 = arith.constant 0 : i32
    return %c0_i32, %c0_i32_0 : i32, i32
  }
  func.func @transform_3(%arg0: i32) -> (i32, i32) {
    %c0_i32 = arith.constant 0 : i32
    %c0_i32_0 = arith.constant 0 : i32
    %c0_i32_1 = arith.constant 0 : i32
    return %c0_i32, %c0_i32_0 : i32, i32
  }
  func.func @transform_4(%arg0: i32) -> (i32, i32) {
    %c0_i32 = arith.constant 0 : i32
    %c0_i32_0 = arith.constant 0 : i32
    %c0_i32_1 = arith.constant 0 : i32
    return %c0_i32, %c0_i32_0 : i32, i32
  }
  func.func @transform_5(%arg0: i32) -> (i32, i32) {
    %c0_i32 = arith.constant 0 : i32
    %c0_i32_0 = arith.constant 0 : i32
    %c0_i32_1 = arith.constant 0 : i32
    return %c0_i32, %c0_i32_0 : i32, i32
  }
  func.func @transform_6(%arg0: i32) -> (i32, i32) {
    %c0_i32 = arith.constant 0 : i32
    %c0_i32_0 = arith.constant 0 : i32
    %c0_i32_1 = arith.constant 0 : i32
    return %c0_i32, %c0_i32_0 : i32, i32
  }
  func.func @transform_7(%arg0: i32) -> (i32, i32) {
    %c0_i32 = arith.constant 0 : i32
    %c0_i32_0 = arith.constant 0 : i32
    %c0_i32_1 = arith.constant 0 : i32
    return %c0_i32, %c0_i32_0 : i32, i32
  }
  func.func @transform_8(%arg0: i32) -> i32 {
    %c0_i32 = arith.constant 0 : i32
    %c0_i32_0 = arith.constant 0 : i32
    return %c0_i32 : i32
  }
  func.func @transform_9(%arg0: i32) -> (i32, i32, i32) {
    %c0_i32 = arith.constant 0 : i32
    %c0_i32_0 = arith.constant 0 : i32
    %c0_i32_1 = arith.constant 0 : i32
    return %arg0, %c0_i32, %c0_i32_0 : i32, i32, i32
  }
}

</mosaic_0001>

<llo_original>
// kernel: tpu_custom_call.1
$region0: #{tpu_custom_call.1}
  #allocation0 [shape = 'u32[]', space=smem, size = 0x4, offset = 0x4, fixed_abs, tag = 'smem constant byte address 0x4 - core index']
  #allocation1 [shape = 'u32[72,128]{1,0:T(1,128)}', space=vmem, size = 0x9000, scoped, tag = 'internal scratch']
  #allocation2 [shape = 'f32[1]{0:T(128)S(6)}', space=smem, size = 0x200, scoped, tag = 'scoped memory for tpu_custom_call.1']
  %s0 = inlined_call_operand.vmem [shape: bf16[64,8,32], index: 0, kind: input, shape index: {}]
  %s1 = inlined_call_operand.vmem [shape: bf16[64,8,8], index: 1, kind: input, shape index: {}]
  %s2 = inlined_call_operand.vmem [shape: bf16[32,64], index: 2, kind: input, shape index: {}]
  %s3 = inlined_call_operand.vmem [shape: f32[1,64], index: 3, kind: input, shape index: {}]
  %s4 = inlined_call_operand.vmem [shape: bf16[64,32], index: 4, kind: input, shape index: {}]
  %s5 = inlined_call_operand.vmem [shape: bf16[8,32], index: 5, kind: input, shape index: {}]
  %s6 = inlined_call_operand.vmem [shape: f32[1,32], index: 6, kind: input, shape index: {}]
  %s7 = inlined_call_operand.vmem [shape: f32[1,32], index: 7, kind: input, shape index: {}]
  %s8 = inlined_call_operand.<no memory space> [shape: f32[1], index: 8, kind: input, shape index: {}]
  %s9 = inlined_call_operand.hbm [shape: f32[2,1,256], index: 9, kind: output, shape index: {}]
  %s10 = sld [smem:[#allocation0]]
  $region69: #{tpu_custom_call.1} parent=0
    _
  %s12 = ssub.s32 1, %s10
  %s13 = scalar_select 0, %s12, %s10
  %14 = sst [smem:[#allocation2]] %s8
  $region1: #{tpu_custom_call.1} parent=0
    #allocation3 [shape = 'u8[2048]{0}', space=vmem, size = 0x800, scoped, tag = 'output window, operand 0']
    #allocation4 [shape = 's32[2]{0}', space=sflag, size = 0x8, scoped, tag = 'scoped memory for tpu_custom_call.1']
    %15 = vsyncpa [#allocation4], 0
    %s16 = scalar_lea.sflag [#allocation4], 1
    %17 = vsyncpa %s16, 0
    loop: start=0, step=1, limit=4
    $region2: #{tpu_custom_call.1} parent=1 // loop_pre_header
      _
    $region3: #{tpu_custom_call.1} parent=1 // loop_header
      %s19 = sphi 0, %s23
      %p20 = scmp.ge.s32.totalorder %s19, 4
      %s29 = sphi 0, %s31
      %s32 = sphi 0, %s29
      %s33 = sphi 0, %s32
      %s49 = sphi 0, %s33
      %s55 = sphi 0, %s57
      %s58 = sphi 0, %s55
      %s59 = sphi 0, %s58
      %s75 = sphi 0, %s59
      %s79 = sphi 0, %s79
      %s81 = sphi 0, %s79
      %s82 = sphi 0, %s81
      %s96 = sphi 0, %s82
      %s100 = sphi 0, %s100
      %s102 = sphi 0, %s100
      %s103 = sphi 0, %s102
      %s117 = sphi 0, %s103
      %s121 = sphi 0, %s121
      %s123 = sphi 0, %s121
      %s124 = sphi 0, %s123
      %s138 = sphi 0, %s124
      %s142 = sphi 0, %s142
      %s144 = sphi 0, %s142
      %s145 = sphi 0, %s144
      %s159 = sphi 0, %s145
      %s163 = sphi 0, %s163
      %s165 = sphi 0, %s163
      %s166 = sphi 0, %s165
      %s180 = sphi 0, %s166
      %s184 = sphi 0, %s184
      %s186 = sphi 0, %s184
      %s187 = sphi 0, %s186
      %s201 = sphi 0, %s187
      %s205 = sphi 0, %s205
      %s207 = sphi 0, %s205
      %s208 = sphi 0, %s207
      %s222 = sphi 0, %s208
      %s228 = sphi 0, %s230
      %s231 = sphi 0, %s228
      %s232 = sphi 0, %s231
      %s248 = sphi 0, %s232
    $region4: #{tpu_custom_call.1} parent=1 // loop_header_branch
      %22 = sbr.rel (%p20) target = $region8
    $region5: #{tpu_custom_call.1} parent=1 // loop_body
      %s24 = ssub.s32 %s19, 1
      %s25 = ssub.s32 %s19, 2
      %s26 = sadd.s32 %s19, 1
      %s27 = ssub.s32 %s19, %s26
      %p28 = scmp.eq.s32.totalorder %s27, 0
      %s30 = sadd.s32 %s29, 1
      %s31 = scalar_select %p28, %s29, %s30
      %p34 = pneg %p28
      %p35 = scmp.eq.s32.totalorder %s19, 1
      %p36 = por %p34, %p35
      %p37 = scmp.ne.s32.totalorder %s29, %s32
      %p38 = scmp.eq.s32.totalorder %s19, 0
      %p39 = por %p37, %p38
      %p40 = scmp.ne.s32.totalorder %s29, %s32
      %p41 = scmp.eq.s32.totalorder %s24, 1
      %p42 = por %p40, %p41
      %p43 = scmp.ne.s32.totalorder %s32, %s33
      %p44 = scmp.eq.s32.totalorder %s24, 0
      %p45 = por %p43, %p44
      %p46 = scmp.ne.s32.totalorder %s32, %s33
      %p47 = scmp.eq.s32.totalorder %s25, 1
      %p48 = por %p46, %p47
      %p50 = scmp.ne.s32.totalorder %s33, %s49
      %p51 = scmp.eq.s32.totalorder %s25, 0
      %p52 = por %p50, %p51
      %s53 = ssub.s32 %s19, %s26
      %p54 = scmp.eq.s32.totalorder %s53, 0
      %s56 = sadd.s32 %s55, 1
      %s57 = scalar_select %p54, %s55, %s56
      %p60 = pneg %p54
      %p61 = scmp.eq.s32.totalorder %s19, 1
      %p62 = por %p60, %p61
      %p63 = scmp.ne.s32.totalorder %s55, %s58
      %p64 = scmp.eq.s32.totalorder %s19, 0
      %p65 = por %p63, %p64
      %p66 = scmp.ne.s32.totalorder %s55, %s58
      %p67 = scmp.eq.s32.totalorder %s24, 1
      %p68 = por %p66, %p67
      %p69 = scmp.ne.s32.totalorder %s58, %s59
      %p70 = scmp.eq.s32.totalorder %s24, 0
      %p71 = por %p69, %p70
      %p72 = scmp.ne.s32.totalorder %s58, %s59
      %p73 = scmp.eq.s32.totalorder %s25, 1
      %p74 = por %p72, %p73
      %p76 = scmp.ne.s32.totalorder %s59, %s75
      %p77 = scmp.eq.s32.totalorder %s25, 0
      %p78 = por %p76, %p77
      %s80 = sadd.s32 %s79, 1
      %p83 = scmp.eq.s32.totalorder %s19, 1
      %p84 = scmp.ne.s32.totalorder %s79, %s81
      %p85 = scmp.eq.s32.totalorder %s19, 0
      %p86 = por %p84, %p85
      %p87 = scmp.ne.s32.totalorder %s79, %s81
      %p88 = scmp.eq.s32.totalorder %s24, 1
      %p89 = por %p87, %p88
      %p90 = scmp.ne.s32.totalorder %s81, %s82
      %p91 = scmp.eq.s32.totalorder %s24, 0
      %p92 = por %p90, %p91
      %p93 = scmp.ne.s32.totalorder %s81, %s82
      %p94 = scmp.eq.s32.totalorder %s25, 1
      %p95 = por %p93, %p94
      %p97 = scmp.ne.s32.totalorder %s82, %s96
      %p98 = scmp.eq.s32.totalorder %s25, 0
      %p99 = por %p97, %p98
      %s101 = sadd.s32 %s100, 1
      %p104 = scmp.eq.s32.totalorder %s19, 1
      %p105 = scmp.ne.s32.totalorder %s100, %s102
      %p106 = scmp.eq.s32.totalorder %s19, 0
      %p107 = por %p105, %p106
      %p108 = scmp.ne.s32.totalorder %s100, %s102
      %p109 = scmp.eq.s32.totalorder %s24, 1
      %p110 = por %p108, %p109
      %p111 = scmp.ne.s32.totalorder %s102, %s103
      %p112 = scmp.eq.s32.totalorder %s24, 0
      %p113 = por %p111, %p112
      %p114 = scmp.ne.s32.totalorder %s102, %s103
      %p115 = scmp.eq.s32.totalorder %s25, 1
      %p116 = por %p114, %p115
      %p118 = scmp.ne.s32.totalorder %s103, %s117
      %p119 = scmp.eq.s32.totalorder %s25, 0
      %p120 = por %p118, %p119
      %s122 = sadd.s32 %s121, 1
      %p125 = scmp.eq.s32.totalorder %s19, 1
      %p126 = scmp.ne.s32.totalorder %s121, %s123
      %p127 = scmp.eq.s32.totalorder %s19, 0
      %p128 = por %p126, %p127
      %p129 = scmp.ne.s32.totalorder %s121, %s123
      %p130 = scmp.eq.s32.totalorder %s24, 1
      %p131 = por %p129, %p130
      %p132 = scmp.ne.s32.totalorder %s123, %s124
      %p133 = scmp.eq.s32.totalorder %s24, 0
      %p134 = por %p132, %p133
      %p135 = scmp.ne.s32.totalorder %s123, %s124
      %p136 = scmp.eq.s32.totalorder %s25, 1
      %p137 = por %p135, %p136
      %p139 = scmp.ne.s32.totalorder %s124, %s138
      %p140 = scmp.eq.s32.totalorder %s25, 0
      %p141 = por %p139, %p140
      %s143 = sadd.s32 %s142, 1
      %p146 = scmp.eq.s32.totalorder %s19, 1
      %p147 = scmp.ne.s32.totalorder %s142, %s144
      %p148 = scmp.eq.s32.totalorder %s19, 0
      %p149 = por %p147, %p148
      %p150 = scmp.ne.s32.totalorder %s142, %s144
      %p151 = scmp.eq.s32.totalorder %s24, 1
      %p152 = por %p150, %p151
      %p153 = scmp.ne.s32.totalorder %s144, %s145
      %p154 = scmp.eq.s32.totalorder %s24, 0
      %p155 = por %p153, %p154
      %p156 = scmp.ne.s32.totalorder %s144, %s145
      %p157 = scmp.eq.s32.totalorder %s25, 1
      %p158 = por %p156, %p157
      %p160 = scmp.ne.s32.totalorder %s145, %s159
      %p161 = scmp.eq.s32.totalorder %s25, 0
      %p162 = por %p160, %p161
      %s164 = sadd.s32 %s163, 1
      %p167 = scmp.eq.s32.totalorder %s19, 1
      %p168 = scmp.ne.s32.totalorder %s163, %s165
      %p169 = scmp.eq.s32.totalorder %s19, 0
      %p170 = por %p168, %p169
      %p171 = scmp.ne.s32.totalorder %s163, %s165
      %p172 = scmp.eq.s32.totalorder %s24, 1
      %p173 = por %p171, %p172
      %p174 = scmp.ne.s32.totalorder %s165, %s166
      %p175 = scmp.eq.s32.totalorder %s24, 0
      %p176 = por %p174, %p175
      %p177 = scmp.ne.s32.totalorder %s165, %s166
      %p178 = scmp.eq.s32.totalorder %s25, 1
      %p179 = por %p177, %p178
      %p181 = scmp.ne.s32.totalorder %s166, %s180
      %p182 = scmp.eq.s32.totalorder %s25, 0
      %p183 = por %p181, %p182
      %s185 = sadd.s32 %s184, 1
      %p188 = scmp.eq.s32.totalorder %s19, 1
      %p189 = scmp.ne.s32.totalorder %s184, %s186
      %p190 = scmp.eq.s32.totalorder %s19, 0
      %p191 = por %p189, %p190
      %p192 = scmp.ne.s32.totalorder %s184, %s186
      %p193 = scmp.eq.s32.totalorder %s24, 1
      %p194 = por %p192, %p193
      %p195 = scmp.ne.s32.totalorder %s186, %s187
      %p196 = scmp.eq.s32.totalorder %s24, 0
      %p197 = por %p195, %p196
      %p198 = scmp.ne.s32.totalorder %s186, %s187
      %p199 = scmp.eq.s32.totalorder %s25, 1
      %p200 = por %p198, %p199
      %p202 = scmp.ne.s32.totalorder %s187, %s201
      %p203 = scmp.eq.s32.totalorder %s25, 0
      %p204 = por %p202, %p203
      %s206 = sadd.s32 %s205, 1
      %p209 = scmp.eq.s32.totalorder %s19, 1
      %p210 = scmp.ne.s32.totalorder %s205, %s207
      %p211 = scmp.eq.s32.totalorder %s19, 0
      %p212 = por %p210, %p211
      %p213 = scmp.ne.s32.totalorder %s205, %s207
      %p214 = scmp.eq.s32.totalorder %s24, 1
      %p215 = por %p213, %p214
      %p216 = scmp.ne.s32.totalorder %s207, %s208
      %p217 = scmp.eq.s32.totalorder %s24, 0
      %p218 = por %p216, %p217
      %p219 = scmp.ne.s32.totalorder %s207, %s208
      %p220 = scmp.eq.s32.totalorder %s25, 1
      %p221 = por %p219, %p220
      %p223 = scmp.ne.s32.totalorder %s208, %s222
      %p224 = scmp.eq.s32.totalorder %s25, 0
      %p225 = por %p223, %p224
      %s226 = ssub.s32 %s19, %s26
      %p227 = scmp.eq.s32.totalorder %s226, 0
      %s229 = sadd.s32 %s228, 1
      %s230 = scalar_select %p227, %s228, %s229
      %p233 = pneg %p227
      %p234 = scmp.eq.s32.totalorder %s19, 1
      %p235 = por %p233, %p234
      %p236 = scmp.ne.s32.totalorder %s228, %s231
      %p237 = scmp.eq.s32.totalorder %s19, 0
      %p238 = por %p236, %p237
      %p239 = scmp.ne.s32.totalorder %s228, %s231
      %p240 = scmp.eq.s32.totalorder %s24, 1
      %p241 = por %p239, %p240
      %p242 = scmp.ne.s32.totalorder %s231, %s232
      %p243 = scmp.eq.s32.totalorder %s24, 0
      %p244 = por %p242, %p243
      %p245 = scmp.ne.s32.totalorder %s231, %s232
      %p246 = scmp.eq.s32.totalorder %s25, 1
      %p247 = por %p245, %p246
      %p249 = scmp.ne.s32.totalorder %s232, %s248
      %p250 = scmp.eq.s32.totalorder %s25, 0
      %p251 = por %p249, %p250
      %p252 = scmp.le.s32.totalorder 1, %s19
      %p253 = scmp.lt.s32.totalorder %s19, 3
      %p254 = pnand %p252, %p253
      %p255 = pneg %p254
      // Predicated region
      $region9: #{tpu_custom_call.1} parent=5 // pred_check
        _
      $region10: #{tpu_custom_call.1} parent=5 // pred_check_branch
        %257 = sbr.rel (%p254) target = $region12
      $region11: #{tpu_custom_call.1} parent=5 // pred_region
        %s258 = ssub.s32 %s19, 1
        // Predicated region
        $region13: #{tpu_custom_call.1} parent=11 // pred_check
          %p259 = pneg %p92
        $region14: #{tpu_custom_call.1} parent=11 // pred_check_branch
          %261 = sbr.rel (%p259) target = $region16
        $region15: #{tpu_custom_call.1} parent=11 // pred_region
          _
        $region16: #{tpu_custom_call.1} parent=11 // pred_fallthru
          _
        // Predicated region
        $region17: #{tpu_custom_call.1} parent=11 // pred_check
          %p262 = pneg %p113
        $region18: #{tpu_custom_call.1} parent=11 // pred_check_branch
          %264 = sbr.rel (%p262) target = $region20
        $region19: #{tpu_custom_call.1} parent=11 // pred_region
          _
        $region20: #{tpu_custom_call.1} parent=11 // pred_fallthru
          _
        // Predicated region
        $region21: #{tpu_custom_call.1} parent=11 // pred_check
          %p265 = pneg %p134
        $region22: #{tpu_custom_call.1} parent=11 // pred_check_branch
          %267 = sbr.rel (%p265) target = $region24
        $region23: #{tpu_custom_call.1} parent=11 // pred_region
          _
        $region24: #{tpu_custom_call.1} parent=11 // pred_fallthru
          _
        // Predicated region
        $region25: #{tpu_custom_call.1} parent=11 // pred_check
          %p268 = pneg %p155
        $region26: #{tpu_custom_call.1} parent=11 // pred_check_branch
          %270 = sbr.rel (%p268) target = $region28
        $region27: #{tpu_custom_call.1} parent=11 // pred_region
          _
        $region28: #{tpu_custom_call.1} parent=11 // pred_fallthru
          _
        // Predicated region
        $region29: #{tpu_custom_call.1} parent=11 // pred_check
          %p271 = pneg %p176
        $region30: #{tpu_custom_call.1} parent=11 // pred_check_branch
          %273 = sbr.rel (%p271) target = $region32
        $region31: #{tpu_custom_call.1} parent=11 // pred_region
          _
        $region32: #{tpu_custom_call.1} parent=11 // pred_fallthru
          _
        // Predicated region
        $region33: #{tpu_custom_call.1} parent=11 // pred_check
          %p274 = pneg %p197
        $region34: #{tpu_custom_call.1} parent=11 // pred_check_branch
          %276 = sbr.rel (%p274) target = $region36
        $region35: #{tpu_custom_call.1} parent=11 // pred_region
          _
        $region36: #{tpu_custom_call.1} parent=11 // pred_fallthru
          _
        // Predicated region
        $region37: #{tpu_custom_call.1} parent=11 // pred_check
          %p277 = pneg %p218
        $region38: #{tpu_custom_call.1} parent=11 // pred_check_branch
          %279 = sbr.rel (%p277) target = $region40
        $region39: #{tpu_custom_call.1} parent=11 // pred_region
          _
        $region40: #{tpu_custom_call.1} parent=11 // pred_fallthru
          _
      $region12: #{tpu_custom_call.1} parent=5 // pred_fallthru
        _
      %p280 = scmp.lt.s32.totalorder %s19, 2
      // Predicated region
      $region41: #{tpu_custom_call.1} parent=5 // pred_check
        %p281 = pneg %p280
      $region42: #{tpu_custom_call.1} parent=5 // pred_check_branch
        %283 = sbr.rel (%p281) target = $region44
      $region43: #{tpu_custom_call.1} parent=5 // pred_region
        // Predicated region
        $region45: #{tpu_custom_call.1} parent=43 // pred_check
          %p284 = pneg %p39
        $region46: #{tpu_custom_call.1} parent=43 // pred_check_branch
          %286 = sbr.rel (%p284) target = $region48
        $region47: #{tpu_custom_call.1} parent=43 // pred_region
          %s287 = smul.u32 32, %s19
          %p288 = scmp.lt.s32.totalorder %s287, 63
          %s289 = scalar_select %p288, %s287, 63
          %s290 = smul.addr %s289, 4
          %s291 = scalar_lea.vmem %s0, %s290
          %s292 = smul.u32 32, %s19
        $region48: #{tpu_custom_call.1} parent=43 // pred_fallthru
          _
        // Predicated region
        $region49: #{tpu_custom_call.1} parent=43 // pred_check
          %p293 = pneg %p65
        $region50: #{tpu_custom_call.1} parent=43 // pred_check_branch
          %295 = sbr.rel (%p293) target = $region52
        $region51: #{tpu_custom_call.1} parent=43 // pred_region
          %s296 = smul.u32 32, %s19
          %p297 = scmp.lt.s32.totalorder %s296, 63
          %s298 = scalar_select %p297, %s296, 63
          %s299 = smul.addr %s298, 4
          %s300 = scalar_lea.vmem %s1, %s299
          %s301 = smul.u32 32, %s19
        $region52: #{tpu_custom_call.1} parent=43 // pred_fallthru
          _
      $region44: #{tpu_custom_call.1} parent=5 // pred_fallthru
        _
      %p302 = scmp.le.s32.totalorder 1, %s19
      %p303 = scmp.lt.s32.totalorder %s19, 3
      %p304 = pnand %p302, %p303
      %p305 = pneg %p304
      // Predicated region
      $region53: #{tpu_custom_call.1} parent=5 // pred_check
        _
      $region54: #{tpu_custom_call.1} parent=5 // pred_check_branch
        %307 = sbr.rel (%p304) target = $region56
      $region55: #{tpu_custom_call.1} parent=5 // pred_region
        %s308 = ssub.s32 %s19, 1
        %s309 = smul.u32 32, %s24
        %p310 = scmp.lt.s32.totalorder %s309, 63
        %s311 = scalar_select %p310, %s309, 63
        %s312 = smul.addr %s311, 4
        %s313 = scalar_lea.vmem %s0, %s312
        %p314 = pneg %p45
        %p315 = pneg %p42
        %s316 = smul.u32 32, %s24
        %p317 = scmp.lt.s32.totalorder %s316, 63
        %s318 = scalar_select %p317, %s316, 63
        %s319 = smul.addr %s318, 4
        %s320 = scalar_lea.vmem %s1, %s319
        %p321 = pneg %p71
        %p322 = pneg %p68
        %p323 = pneg %p92
        %p324 = pneg %p89
        %p325 = pneg %p113
        %p326 = pneg %p110
        %p327 = pneg %p134
        %p328 = pneg %p131
        %p329 = pneg %p155
        %p330 = pneg %p152
        %p331 = pneg %p176
        %p332 = pneg %p173
        %p333 = pneg %p197
        %p334 = pneg %p194
        %p335 = pneg %p218
        %p336 = pneg %p215
        %p337 = pneg %p244
        %p338 = pneg %p241
        %s339 = sand.u32 %s231, 1
        %s340 = scalar_lea.sflag [#allocation4], %s339
        %s341 = sand.u32 %s231, 1
        %s342 = smul.addr %s341, 2
        %s343 = scalar_lea.vmem [#allocation3], %s342
        %s344 = smul.u32 32, %s24
        %p345 = scmp.lt.s32.totalorder %s344, 63
        %s346 = scalar_select %p345, %s344, 63
        %s347 = smul.addr %s346, 4
        %s348 = scalar_lea.vmem %s0, %s347
        %s349 = smul.u32 32, %s24
        %s350 = smul.u32 32, %s24
        %p351 = scmp.lt.s32.totalorder %s350, 63
        %s352 = scalar_select %p351, %s350, 63
        %s353 = smul.addr %s352, 4
        %s354 = scalar_lea.vmem %s1, %s353
        %s355 = smul.u32 32, %s24
        %v357 = vld [vmem:[%s348] sm:$0xf]
        %v358 = vld [vmem:[%s348 + $0x4] sm:$0xf]
        %v359 = vld [vmem:[%s348 + $0x8] sm:$0xf]
        %v360 = vld [vmem:[%s348 + $0xc] sm:$0xf]
        %v361 = vld [vmem:[%s348 + $0x10] sm:$0xf]
        %v362 = vld [vmem:[%s348 + $0x14] sm:$0xf]
        %v363 = vld [vmem:[%s348 + $0x18] sm:$0xf]
        %v364 = vld [vmem:[%s348 + $0x1c] sm:$0xf]
        %v365 = vld [vmem:[%s348 + $0x20] sm:$0xf]
        %v366 = vld [vmem:[%s348 + $0x24] sm:$0xf]
        %v367 = vld [vmem:[%s348 + $0x28] sm:$0xf]
        %v368 = vld [vmem:[%s348 + $0x2c] sm:$0xf]
        %v369 = vld [vmem:[%s348 + $0x30] sm:$0xf]
        %v370 = vld [vmem:[%s348 + $0x34] sm:$0xf]
        %v371 = vld [vmem:[%s348 + $0x38] sm:$0xf]
        %v372 = vld [vmem:[%s348 + $0x3c] sm:$0xf]
        %v373 = vld [vmem:[%s348 + $0x40] sm:$0xf]
        %v374 = vld [vmem:[%s348 + $0x44] sm:$0xf]
        %v375 = vld [vmem:[%s348 + $0x48] sm:$0xf]
        %v376 = vld [vmem:[%s348 + $0x4c] sm:$0xf]
        %v377 = vld [vmem:[%s348 + $0x50] sm:$0xf]
        %v378 = vld [vmem:[%s348 + $0x54] sm:$0xf]
        %v379 = vld [vmem:[%s348 + $0x58] sm:$0xf]
        %v380 = vld [vmem:[%s348 + $0x5c] sm:$0xf]
        %v381 = vld [vmem:[%s348 + $0x60] sm:$0xf]
        %v382 = vld [vmem:[%s348 + $0x64] sm:$0xf]
        %v383 = vld [vmem:[%s348 + $0x68] sm:$0xf]
        %v384 = vld [vmem:[%s348 + $0x6c] sm:$0xf]
        %v385 = vld [vmem:[%s348 + $0x70] sm:$0xf]
        %v386 = vld [vmem:[%s348 + $0x74] sm:$0xf]
        %v387 = vld [vmem:[%s348 + $0x78] sm:$0xf]
        %v388 = vld [vmem:[%s348 + $0x7c] sm:$0xf]
        %v389 = vunpack.c.l.bf16 %v357
        %v390 = vunpack.c.l.bf16 %v358
        %v391 = vunpack.c.l.bf16 %v359
        %v392 = vunpack.c.l.bf16 %v360
        %v393 = vunpack.c.l.bf16 %v361
        %v394 = vunpack.c.l.bf16 %v362
        %v395 = vunpack.c.l.bf16 %v363
        %v396 = vunpack.c.l.bf16 %v364
        %v397 = vunpack.c.l.bf16 %v365
        %v398 = vunpack.c.l.bf16 %v366
        %v399 = vunpack.c.l.bf16 %v367
        %v400 = vunpack.c.l.bf16 %v368
        %v401 = vunpack.c.l.bf16 %v369
        %v402 = vunpack.c.l.bf16 %v370
        %v403 = vunpack.c.l.bf16 %v371
        %v404 = vunpack.c.l.bf16 %v372
        %v405 = vunpack.c.l.bf16 %v373
        %v406 = vunpack.c.l.bf16 %v374
        %v407 = vunpack.c.l.bf16 %v375
        %v408 = vunpack.c.l.bf16 %v376
        %v409 = vunpack.c.l.bf16 %v377
        %v410 = vunpack.c.l.bf16 %v378
        %v411 = vunpack.c.l.bf16 %v379
        %v412 = vunpack.c.l.bf16 %v380
        %v413 = vunpack.c.l.bf16 %v381
        %v414 = vunpack.c.l.bf16 %v382
        %v415 = vunpack.c.l.bf16 %v383
        %v416 = vunpack.c.l.bf16 %v384
        %v417 = vunpack.c.l.bf16 %v385
        %v418 = vunpack.c.l.bf16 %v386
        %v419 = vunpack.c.l.bf16 %v387
        %v420 = vunpack.c.l.bf16 %v388
        %vm421 = vcmask 261120
        %v422 = vsel %vm421, %v389, 0.0
        %v423 = vrot.slane %v422, 4
        %v424 = vadd.f32 %v422, %v423
        %v425 = vrot.slane %v424, 2
        %v426 = vadd.f32 %v424, %v425
        %v427 = vrot.slane %v426, 1
        %v428 = vadd.f32 %v426, %v427
        %v429 = vsel %vm421, %v390, 0.0
        %v430 = vrot.slane %v429, 4
        %v431 = vadd.f32 %v429, %v430
        %v432 = vrot.slane %v431, 2
        %v433 = vadd.f32 %v431, %v432
        %v434 = vrot.slane %v433, 1
        %v435 = vadd.f32 %v433, %v434
        %v436 = vsel %vm421, %v391, 0.0
        %v437 = vrot.slane %v436, 4
        %v438 = vadd.f32 %v436, %v437
        %v439 = vrot.slane %v438, 2
        %v440 = vadd.f32 %v438, %v439
        %v441 = vrot.slane %v440, 1
        %v442 = vadd.f32 %v440, %v441
        %v443 = vsel %vm421, %v392, 0.0
        %v444 = vrot.slane %v443, 4
        %v445 = vadd.f32 %v443, %v444
        %v446 = vrot.slane %v445, 2
        %v447 = vadd.f32 %v445, %v446
        %v448 = vrot.slane %v447, 1
        %v449 = vadd.f32 %v447, %v448
        %v450 = vsel %vm421, %v393, 0.0
        %v451 = vrot.slane %v450, 4
        %v452 = vadd.f32 %v450, %v451
        %v453 = vrot.slane %v452, 2
        %v454 = vadd.f32 %v452, %v453
        %v455 = vrot.slane %v454, 1
        %v456 = vadd.f32 %v454, %v455
        %v457 = vsel %vm421, %v394, 0.0
        %v458 = vrot.slane %v457, 4
        %v459 = vadd.f32 %v457, %v458
        %v460 = vrot.slane %v459, 2
        %v461 = vadd.f32 %v459, %v460
        %v462 = vrot.slane %v461, 1
        %v463 = vadd.f32 %v461, %v462
        %v464 = vsel %vm421, %v395, 0.0
        %v465 = vrot.slane %v464, 4
        %v466 = vadd.f32 %v464, %v465
        %v467 = vrot.slane %v466, 2
        %v468 = vadd.f32 %v466, %v467
        %v469 = vrot.slane %v468, 1
        %v470 = vadd.f32 %v468, %v469
        %v471 = vsel %vm421, %v396, 0.0
        %v472 = vrot.slane %v471, 4
        %v473 = vadd.f32 %v471, %v472
        %v474 = vrot.slane %v473, 2
        %v475 = vadd.f32 %v473, %v474
        %v476 = vrot.slane %v475, 1
        %v477 = vadd.f32 %v475, %v476
        %v478 = vsel %vm421, %v397, 0.0
        %v479 = vrot.slane %v478, 4
        %v480 = vadd.f32 %v478, %v479
        %v481 = vrot.slane %v480, 2
        %v482 = vadd.f32 %v480, %v481
        %v483 = vrot.slane %v482, 1
        %v484 = vadd.f32 %v482, %v483
        %v485 = vsel %vm421, %v398, 0.0
        %v486 = vrot.slane %v485, 4
        %v487 = vadd.f32 %v485, %v486
        %v488 = vrot.slane %v487, 2
        %v489 = vadd.f32 %v487, %v488
        %v490 = vrot.slane %v489, 1
        %v491 = vadd.f32 %v489, %v490
        %v492 = vsel %vm421, %v399, 0.0
        %v493 = vrot.slane %v492, 4
        %v494 = vadd.f32 %v492, %v493
        %v495 = vrot.slane %v494, 2
        %v496 = vadd.f32 %v494, %v495
        %v497 = vrot.slane %v496, 1
        %v498 = vadd.f32 %v496, %v497
        %v499 = vsel %vm421, %v400, 0.0
        %v500 = vrot.slane %v499, 4
        %v501 = vadd.f32 %v499, %v500
        %v502 = vrot.slane %v501, 2
        %v503 = vadd.f32 %v501, %v502
        %v504 = vrot.slane %v503, 1
        %v505 = vadd.f32 %v503, %v504
        %v506 = vsel %vm421, %v401, 0.0
        %v507 = vrot.slane %v506, 4
        %v508 = vadd.f32 %v506, %v507
        %v509 = vrot.slane %v508, 2
        %v510 = vadd.f32 %v508, %v509
        %v511 = vrot.slane %v510, 1
        %v512 = vadd.f32 %v510, %v511
        %v513 = vsel %vm421, %v402, 0.0
        %v514 = vrot.slane %v513, 4
        %v515 = vadd.f32 %v513, %v514
        %v516 = vrot.slane %v515, 2
        %v517 = vadd.f32 %v515, %v516
        %v518 = vrot.slane %v517, 1
        %v519 = vadd.f32 %v517, %v518
        %v520 = vsel %vm421, %v403, 0.0
        %v521 = vrot.slane %v520, 4
        %v522 = vadd.f32 %v520, %v521
        %v523 = vrot.slane %v522, 2
        %v524 = vadd.f32 %v522, %v523
        %v525 = vrot.slane %v524, 1
        %v526 = vadd.f32 %v524, %v525
        %v527 = vsel %vm421, %v404, 0.0
        %v528 = vrot.slane %v527, 4
        %v529 = vadd.f32 %v527, %v528
        %v530 = vrot.slane %v529, 2
        %v531 = vadd.f32 %v529, %v530
        %v532 = vrot.slane %v531, 1
        %v533 = vadd.f32 %v531, %v532
        %v534 = vsel %vm421, %v405, 0.0
        %v535 = vrot.slane %v534, 4
        %v536 = vadd.f32 %v534, %v535
        %v537 = vrot.slane %v536, 2
        %v538 = vadd.f32 %v536, %v537
        %v539 = vrot.slane %v538, 1
        %v540 = vadd.f32 %v538, %v539
        %v541 = vsel %vm421, %v406, 0.0
        %v542 = vrot.slane %v541, 4
        %v543 = vadd.f32 %v541, %v542
        %v544 = vrot.slane %v543, 2
        %v545 = vadd.f32 %v543, %v544
        %v546 = vrot.slane %v545, 1
        %v547 = vadd.f32 %v545, %v546
        %v548 = vsel %vm421, %v407, 0.0
        %v549 = vrot.slane %v548, 4
        %v550 = vadd.f32 %v548, %v549
        %v551 = vrot.slane %v550, 2
        %v552 = vadd.f32 %v550, %v551
        %v553 = vrot.slane %v552, 1
        %v554 = vadd.f32 %v552, %v553
        %v555 = vsel %vm421, %v408, 0.0
        %v556 = vrot.slane %v555, 4
        %v557 = vadd.f32 %v555, %v556
        %v558 = vrot.slane %v557, 2
        %v559 = vadd.f32 %v557, %v558
        %v560 = vrot.slane %v559, 1
        %v561 = vadd.f32 %v559, %v560
        %v562 = vsel %vm421, %v409, 0.0
        %v563 = vrot.slane %v562, 4
        %v564 = vadd.f32 %v562, %v563
        %v565 = vrot.slane %v564, 2
        %v566 = vadd.f32 %v564, %v565
        %v567 = vrot.slane %v566, 1
        %v568 = vadd.f32 %v566, %v567
        %v569 = vsel %vm421, %v410, 0.0
        %v570 = vrot.slane %v569, 4
        %v571 = vadd.f32 %v569, %v570
        %v572 = vrot.slane %v571, 2
        %v573 = vadd.f32 %v571, %v572
        %v574 = vrot.slane %v573, 1
        %v575 = vadd.f32 %v573, %v574
        %v576 = vsel %vm421, %v411, 0.0
        %v577 = vrot.slane %v576, 4
        %v578 = vadd.f32 %v576, %v577
        %v579 = vrot.slane %v578, 2
        %v580 = vadd.f32 %v578, %v579
        %v581 = vrot.slane %v580, 1
        %v582 = vadd.f32 %v580, %v581
        %v583 = vsel %vm421, %v412, 0.0
        %v584 = vrot.slane %v583, 4
        %v585 = vadd.f32 %v583, %v584
        %v586 = vrot.slane %v585, 2
        %v587 = vadd.f32 %v585, %v586
        %v588 = vrot.slane %v587, 1
        %v589 = vadd.f32 %v587, %v588
        %v590 = vsel %vm421, %v413, 0.0
        %v591 = vrot.slane %v590, 4
        %v592 = vadd.f32 %v590, %v591
        %v593 = vrot.slane %v592, 2
        %v594 = vadd.f32 %v592, %v593
        %v595 = vrot.slane %v594, 1
        %v596 = vadd.f32 %v594, %v595
        %v597 = vsel %vm421, %v414, 0.0
        %v598 = vrot.slane %v597, 4
        %v599 = vadd.f32 %v597, %v598
        %v600 = vrot.slane %v599, 2
        %v601 = vadd.f32 %v599, %v600
        %v602 = vrot.slane %v601, 1
        %v603 = vadd.f32 %v601, %v602
        %v604 = vsel %vm421, %v415, 0.0
        %v605 = vrot.slane %v604, 4
        %v606 = vadd.f32 %v604, %v605
        %v607 = vrot.slane %v606, 2
        %v608 = vadd.f32 %v606, %v607
        %v609 = vrot.slane %v608, 1
        %v610 = vadd.f32 %v608, %v609
        %v611 = vsel %vm421, %v416, 0.0
        %v612 = vrot.slane %v611, 4
        %v613 = vadd.f32 %v611, %v612
        %v614 = vrot.slane %v613, 2
        %v615 = vadd.f32 %v613, %v614
        %v616 = vrot.slane %v615, 1
        %v617 = vadd.f32 %v615, %v616
        %v618 = vsel %vm421, %v417, 0.0
        %v619 = vrot.slane %v618, 4
        %v620 = vadd.f32 %v618, %v619
        %v621 = vrot.slane %v620, 2
        %v622 = vadd.f32 %v620, %v621
        %v623 = vrot.slane %v622, 1
        %v624 = vadd.f32 %v622, %v623
        %v625 = vsel %vm421, %v418, 0.0
        %v626 = vrot.slane %v625, 4
        %v627 = vadd.f32 %v625, %v626
        %v628 = vrot.slane %v627, 2
        %v629 = vadd.f32 %v627, %v628
        %v630 = vrot.slane %v629, 1
        %v631 = vadd.f32 %v629, %v630
        %v632 = vsel %vm421, %v419, 0.0
        %v633 = vrot.slane %v632, 4
        %v634 = vadd.f32 %v632, %v633
        %v635 = vrot.slane %v634, 2
        %v636 = vadd.f32 %v634, %v635
        %v637 = vrot.slane %v636, 1
        %v638 = vadd.f32 %v636, %v637
        %v639 = vsel %vm421, %v420, 0.0
        %v640 = vrot.slane %v639, 4
        %v641 = vadd.f32 %v639, %v640
        %v642 = vrot.slane %v641, 2
        %v643 = vadd.f32 %v641, %v642
        %v644 = vrot.slane %v643, 1
        %v645 = vadd.f32 %v643, %v644
        %v646 = vrcp.pop 8.0
        %v647 = vmul.f32 8.0, %v646
        %v648 = vsub.f32 1.0, %v647
        %v649 = vmul.f32 %v646, %v648
        %v650 = vadd.f32 %v646, %v649
        %vm651 = vweird.f32 %v646
        %v652 = vsel %vm651, %v646, %v650
        %v653 = vmul.f32 %v428, %v652
        %v654 = vmul.f32 %v435, %v652
        %v655 = vmul.f32 %v442, %v652
        %v656 = vmul.f32 %v449, %v652
        %v657 = vmul.f32 %v456, %v652
        %v658 = vmul.f32 %v463, %v652
        %v659 = vmul.f32 %v470, %v652
        %v660 = vmul.f32 %v477, %v652
        %v661 = vmul.f32 %v484, %v652
        %v662 = vmul.f32 %v491, %v652
        %v663 = vmul.f32 %v498, %v652
        %v664 = vmul.f32 %v505, %v652
        %v665 = vmul.f32 %v512, %v652
        %v666 = vmul.f32 %v519, %v652
        %v667 = vmul.f32 %v526, %v652
        %v668 = vmul.f32 %v533, %v652
        %v669 = vmul.f32 %v540, %v652
        %v670 = vmul.f32 %v547, %v652
        %v671 = vmul.f32 %v554, %v652
        %v672 = vmul.f32 %v561, %v652
        %v673 = vmul.f32 %v568, %v652
        %v674 = vmul.f32 %v575, %v652
        %v675 = vmul.f32 %v582, %v652
        %v676 = vmul.f32 %v589, %v652
        %v677 = vmul.f32 %v596, %v652
        %v678 = vmul.f32 %v603, %v652
        %v679 = vmul.f32 %v610, %v652
        %v680 = vmul.f32 %v617, %v652
        %v681 = vmul.f32 %v624, %v652
        %v682 = vmul.f32 %v631, %v652
        %v683 = vmul.f32 %v638, %v652
        %v684 = vmul.f32 %v645, %v652
        %v685 = vsub.f32 %v389, %v653
        %v686 = vsub.f32 %v390, %v654
        %v687 = vsub.f32 %v391, %v655
        %v688 = vsub.f32 %v392, %v656
        %v689 = vsub.f32 %v393, %v657
        %v690 = vsub.f32 %v394, %v658
        %v691 = vsub.f32 %v395, %v659
        %v692 = vsub.f32 %v396, %v660
        %v693 = vsub.f32 %v397, %v661
        %v694 = vsub.f32 %v398, %v662
        %v695 = vsub.f32 %v399, %v663
        %v696 = vsub.f32 %v400, %v664
        %v697 = vsub.f32 %v401, %v665
        %v698 = vsub.f32 %v402, %v666
        %v699 = vsub.f32 %v403, %v667
        %v700 = vsub.f32 %v404, %v668
        %v701 = vsub.f32 %v405, %v669
        %v702 = vsub.f32 %v406, %v670
        %v703 = vsub.f32 %v407, %v671
        %v704 = vsub.f32 %v408, %v672
        %v705 = vsub.f32 %v409, %v673
        %v706 = vsub.f32 %v410, %v674
        %v707 = vsub.f32 %v411, %v675
        %v708 = vsub.f32 %v412, %v676
        %v709 = vsub.f32 %v413, %v677
        %v710 = vsub.f32 %v414, %v678
        %v711 = vsub.f32 %v415, %v679
        %v712 = vsub.f32 %v416, %v680
        %v713 = vsub.f32 %v417, %v681
        %v714 = vsub.f32 %v418, %v682
        %v715 = vsub.f32 %v419, %v683
        %v716 = vsub.f32 %v420, %v684
        %v717 = vmul.f32 %v685, %v685
        %v718 = vmul.f32 %v686, %v686
        %v719 = vmul.f32 %v687, %v687
        %v720 = vmul.f32 %v688, %v688
        %v721 = vmul.f32 %v689, %v689
        %v722 = vmul.f32 %v690, %v690
        %v723 = vmul.f32 %v691, %v691
        %v724 = vmul.f32 %v692, %v692
        %v725 = vmul.f32 %v693, %v693
        %v726 = vmul.f32 %v694, %v694
        %v727 = vmul.f32 %v695, %v695
        %v728 = vmul.f32 %v696, %v696
        %v729 = vmul.f32 %v697, %v697
        %v730 = vmul.f32 %v698, %v698
        %v731 = vmul.f32 %v699, %v699
        %v732 = vmul.f32 %v700, %v700
        %v733 = vmul.f32 %v701, %v701
        %v734 = vmul.f32 %v702, %v702
        %v735 = vmul.f32 %v703, %v703
        %v736 = vmul.f32 %v704, %v704
        %v737 = vmul.f32 %v705, %v705
        %v738 = vmul.f32 %v706, %v706
        %v739 = vmul.f32 %v707, %v707
        %v740 = vmul.f32 %v708, %v708
        %v741 = vmul.f32 %v709, %v709
        %v742 = vmul.f32 %v710, %v710
        %v743 = vmul.f32 %v711, %v711
        %v744 = vmul.f32 %v712, %v712
        %v745 = vmul.f32 %v713, %v713
        %v746 = vmul.f32 %v714, %v714
        %v747 = vmul.f32 %v715, %v715
        %v748 = vmul.f32 %v716, %v716
        %v749 = vsel %vm421, %v717, 0.0
        %v750 = vrot.slane %v749, 4
        %v751 = vadd.f32 %v749, %v750
        %v752 = vrot.slane %v751, 2
        %v753 = vadd.f32 %v751, %v752
        %v754 = vrot.slane %v753, 1
        %v755 = vadd.f32 %v753, %v754
        %v756 = vsel %vm421, %v718, 0.0
        %v757 = vrot.slane %v756, 4
        %v758 = vadd.f32 %v756, %v757
        %v759 = vrot.slane %v758, 2
        %v760 = vadd.f32 %v758, %v759
        %v761 = vrot.slane %v760, 1
        %v762 = vadd.f32 %v760, %v761
        %v763 = vsel %vm421, %v719, 0.0
        %v764 = vrot.slane %v763, 4
        %v765 = vadd.f32 %v763, %v764
        %v766 = vrot.slane %v765, 2
        %v767 = vadd.f32 %v765, %v766
        %v768 = vrot.slane %v767, 1
        %v769 = vadd.f32 %v767, %v768
        %v770 = vsel %vm421, %v720, 0.0
        %v771 = vrot.slane %v770, 4
        %v772 = vadd.f32 %v770, %v771
        %v773 = vrot.slane %v772, 2
        %v774 = vadd.f32 %v772, %v773
        %v775 = vrot.slane %v774, 1
        %v776 = vadd.f32 %v774, %v775
        %v777 = vsel %vm421, %v721, 0.0
        %v778 = vrot.slane %v777, 4
        %v779 = vadd.f32 %v777, %v778
        %v780 = vrot.slane %v779, 2
        %v781 = vadd.f32 %v779, %v780
        %v782 = vrot.slane %v781, 1
        %v783 = vadd.f32 %v781, %v782
        %v784 = vsel %vm421, %v722, 0.0
        %v785 = vrot.slane %v784, 4
        %v786 = vadd.f32 %v784, %v785
        %v787 = vrot.slane %v786, 2
        %v788 = vadd.f32 %v786, %v787
        %v789 = vrot.slane %v788, 1
        %v790 = vadd.f32 %v788, %v789
        %v791 = vsel %vm421, %v723, 0.0
        %v792 = vrot.slane %v791, 4
        %v793 = vadd.f32 %v791, %v792
        %v794 = vrot.slane %v793, 2
        %v795 = vadd.f32 %v793, %v794
        %v796 = vrot.slane %v795, 1
        %v797 = vadd.f32 %v795, %v796
        %v798 = vsel %vm421, %v724, 0.0
        %v799 = vrot.slane %v798, 4
        %v800 = vadd.f32 %v798, %v799
        %v801 = vrot.slane %v800, 2
        %v802 = vadd.f32 %v800, %v801
        %v803 = vrot.slane %v802, 1
        %v804 = vadd.f32 %v802, %v803
        %v805 = vsel %vm421, %v725, 0.0
        %v806 = vrot.slane %v805, 4
        %v807 = vadd.f32 %v805, %v806
        %v808 = vrot.slane %v807, 2
        %v809 = vadd.f32 %v807, %v808
        %v810 = vrot.slane %v809, 1
        %v811 = vadd.f32 %v809, %v810
        %v812 = vsel %vm421, %v726, 0.0
        %v813 = vrot.slane %v812, 4
        %v814 = vadd.f32 %v812, %v813
        %v815 = vrot.slane %v814, 2
        %v816 = vadd.f32 %v814, %v815
        %v817 = vrot.slane %v816, 1
        %v818 = vadd.f32 %v816, %v817
        %v819 = vsel %vm421, %v727, 0.0
        %v820 = vrot.slane %v819, 4
        %v821 = vadd.f32 %v819, %v820
        %v822 = vrot.slane %v821, 2
        %v823 = vadd.f32 %v821, %v822
        %v824 = vrot.slane %v823, 1
        %v825 = vadd.f32 %v823, %v824
        %v826 = vsel %vm421, %v728, 0.0
        %v827 = vrot.slane %v826, 4
        %v828 = vadd.f32 %v826, %v827
        %v829 = vrot.slane %v828, 2
        %v830 = vadd.f32 %v828, %v829
        %v831 = vrot.slane %v830, 1
        %v832 = vadd.f32 %v830, %v831
        %v833 = vsel %vm421, %v729, 0.0
        %v834 = vrot.slane %v833, 4
        %v835 = vadd.f32 %v833, %v834
        %v836 = vrot.slane %v835, 2
        %v837 = vadd.f32 %v835, %v836
        %v838 = vrot.slane %v837, 1
        %v839 = vadd.f32 %v837, %v838
        %v840 = vsel %vm421, %v730, 0.0
        %v841 = vrot.slane %v840, 4
        %v842 = vadd.f32 %v840, %v841
        %v843 = vrot.slane %v842, 2
        %v844 = vadd.f32 %v842, %v843
        %v845 = vrot.slane %v844, 1
        %v846 = vadd.f32 %v844, %v845
        %v847 = vsel %vm421, %v731, 0.0
        %v848 = vrot.slane %v847, 4
        %v849 = vadd.f32 %v847, %v848
        %v850 = vrot.slane %v849, 2
        %v851 = vadd.f32 %v849, %v850
        %v852 = vrot.slane %v851, 1
        %v853 = vadd.f32 %v851, %v852
        %v854 = vsel %vm421, %v732, 0.0
        %v855 = vrot.slane %v854, 4
        %v856 = vadd.f32 %v854, %v855
        %v857 = vrot.slane %v856, 2
        %v858 = vadd.f32 %v856, %v857
        %v859 = vrot.slane %v858, 1
        %v860 = vadd.f32 %v858, %v859
        %v861 = vsel %vm421, %v733, 0.0
        %v862 = vrot.slane %v861, 4
        %v863 = vadd.f32 %v861, %v862
        %v864 = vrot.slane %v863, 2
        %v865 = vadd.f32 %v863, %v864
        %v866 = vrot.slane %v865, 1
        %v867 = vadd.f32 %v865, %v866
        %v868 = vsel %vm421, %v734, 0.0
        %v869 = vrot.slane %v868, 4
        %v870 = vadd.f32 %v868, %v869
        %v871 = vrot.slane %v870, 2
        %v872 = vadd.f32 %v870, %v871
        %v873 = vrot.slane %v872, 1
        %v874 = vadd.f32 %v872, %v873
        %v875 = vsel %vm421, %v735, 0.0
        %v876 = vrot.slane %v875, 4
        %v877 = vadd.f32 %v875, %v876
        %v878 = vrot.slane %v877, 2
        %v879 = vadd.f32 %v877, %v878
        %v880 = vrot.slane %v879, 1
        %v881 = vadd.f32 %v879, %v880
        %v882 = vsel %vm421, %v736, 0.0
        %v883 = vrot.slane %v882, 4
        %v884 = vadd.f32 %v882, %v883
        %v885 = vrot.slane %v884, 2
        %v886 = vadd.f32 %v884, %v885
        %v887 = vrot.slane %v886, 1
        %v888 = vadd.f32 %v886, %v887
        %v889 = vsel %vm421, %v737, 0.0
        %v890 = vrot.slane %v889, 4
        %v891 = vadd.f32 %v889, %v890
        %v892 = vrot.slane %v891, 2
        %v893 = vadd.f32 %v891, %v892
        %v894 = vrot.slane %v893, 1
        %v895 = vadd.f32 %v893, %v894
        %v896 = vsel %vm421, %v738, 0.0
        %v897 = vrot.slane %v896, 4
        %v898 = vadd.f32 %v896, %v897
        %v899 = vrot.slane %v898, 2
        %v900 = vadd.f32 %v898, %v899
        %v901 = vrot.slane %v900, 1
        %v902 = vadd.f32 %v900, %v901
        %v903 = vsel %vm421, %v739, 0.0
        %v904 = vrot.slane %v903, 4
        %v905 = vadd.f32 %v903, %v904
        %v906 = vrot.slane %v905, 2
        %v907 = vadd.f32 %v905, %v906
        %v908 = vrot.slane %v907, 1
        %v909 = vadd.f32 %v907, %v908
        %v910 = vsel %vm421, %v740, 0.0
        %v911 = vrot.slane %v910, 4
        %v912 = vadd.f32 %v910, %v911
        %v913 = vrot.slane %v912, 2
        %v914 = vadd.f32 %v912, %v913
        %v915 = vrot.slane %v914, 1
        %v916 = vadd.f32 %v914, %v915
        %v917 = vsel %vm421, %v741, 0.0
        %v918 = vrot.slane %v917, 4
        %v919 = vadd.f32 %v917, %v918
        %v920 = vrot.slane %v919, 2
        %v921 = vadd.f32 %v919, %v920
        %v922 = vrot.slane %v921, 1
        %v923 = vadd.f32 %v921, %v922
        %v924 = vsel %vm421, %v742, 0.0
        %v925 = vrot.slane %v924, 4
        %v926 = vadd.f32 %v924, %v925
        %v927 = vrot.slane %v926, 2
        %v928 = vadd.f32 %v926, %v927
        %v929 = vrot.slane %v928, 1
        %v930 = vadd.f32 %v928, %v929
        %v931 = vsel %vm421, %v743, 0.0
        %v932 = vrot.slane %v931, 4
        %v933 = vadd.f32 %v931, %v932
        %v934 = vrot.slane %v933, 2
        %v935 = vadd.f32 %v933, %v934
        %v936 = vrot.slane %v935, 1
        %v937 = vadd.f32 %v935, %v936
        %v938 = vsel %vm421, %v744, 0.0
        %v939 = vrot.slane %v938, 4
        %v940 = vadd.f32 %v938, %v939
        %v941 = vrot.slane %v940, 2
        %v942 = vadd.f32 %v940, %v941
        %v943 = vrot.slane %v942, 1
        %v944 = vadd.f32 %v942, %v943
        %v945 = vsel %vm421, %v745, 0.0
        %v946 = vrot.slane %v945, 4
        %v947 = vadd.f32 %v945, %v946
        %v948 = vrot.slane %v947, 2
        %v949 = vadd.f32 %v947, %v948
        %v950 = vrot.slane %v949, 1
        %v951 = vadd.f32 %v949, %v950
        %v952 = vsel %vm421, %v746, 0.0
        %v953 = vrot.slane %v952, 4
        %v954 = vadd.f32 %v952, %v953
        %v955 = vrot.slane %v954, 2
        %v956 = vadd.f32 %v954, %v955
        %v957 = vrot.slane %v956, 1
        %v958 = vadd.f32 %v956, %v957
        %v959 = vsel %vm421, %v747, 0.0
        %v960 = vrot.slane %v959, 4
        %v961 = vadd.f32 %v959, %v960
        %v962 = vrot.slane %v961, 2
        %v963 = vadd.f32 %v961, %v962
        %v964 = vrot.slane %v963, 1
        %v965 = vadd.f32 %v963, %v964
        %v966 = vsel %vm421, %v748, 0.0
        %v967 = vrot.slane %v966, 4
        %v968 = vadd.f32 %v966, %v967
        %v969 = vrot.slane %v968, 2
        %v970 = vadd.f32 %v968, %v969
        %v971 = vrot.slane %v970, 1
        %v972 = vadd.f32 %v970, %v971
        %v973 = vmul.f32 %v755, %v652
        %v974 = vmul.f32 %v762, %v652
        %v975 = vmul.f32 %v769, %v652
        %v976 = vmul.f32 %v776, %v652
        %v977 = vmul.f32 %v783, %v652
        %v978 = vmul.f32 %v790, %v652
        %v979 = vmul.f32 %v797, %v652
        %v980 = vmul.f32 %v804, %v652
        %v981 = vmul.f32 %v811, %v652
        %v982 = vmul.f32 %v818, %v652
        %v983 = vmul.f32 %v825, %v652
        %v984 = vmul.f32 %v832, %v652
        %v985 = vmul.f32 %v839, %v652
        %v986 = vmul.f32 %v846, %v652
        %v987 = vmul.f32 %v853, %v652
        %v988 = vmul.f32 %v860, %v652
        %v989 = vmul.f32 %v867, %v652
        %v990 = vmul.f32 %v874, %v652
        %v991 = vmul.f32 %v881, %v652
        %v992 = vmul.f32 %v888, %v652
        %v993 = vmul.f32 %v895, %v652
        %v994 = vmul.f32 %v902, %v652
        %v995 = vmul.f32 %v909, %v652
        %v996 = vmul.f32 %v916, %v652
        %v997 = vmul.f32 %v923, %v652
        %v998 = vmul.f32 %v930, %v652
        %v999 = vmul.f32 %v937, %v652
        %v1000 = vmul.f32 %v944, %v652
        %v1001 = vmul.f32 %v951, %v652
        %v1002 = vmul.f32 %v958, %v652
        %v1003 = vmul.f32 %v965, %v652
        %v1004 = vmul.f32 %v972, %v652
        %v1005 = vadd.f32 %v973, 1e-05
        %v1006 = vadd.f32 %v974, 1e-05
        %v1007 = vadd.f32 %v975, 1e-05
        %v1008 = vadd.f32 %v976, 1e-05
        %v1009 = vadd.f32 %v977, 1e-05
        %v1010 = vadd.f32 %v978, 1e-05
        %v1011 = vadd.f32 %v979, 1e-05
        %v1012 = vadd.f32 %v980, 1e-05
        %v1013 = vadd.f32 %v981, 1e-05
        %v1014 = vadd.f32 %v982, 1e-05
        %v1015 = vadd.f32 %v983, 1e-05
        %v1016 = vadd.f32 %v984, 1e-05
        %v1017 = vadd.f32 %v985, 1e-05
        %v1018 = vadd.f32 %v986, 1e-05
        %v1019 = vadd.f32 %v987, 1e-05
        %v1020 = vadd.f32 %v988, 1e-05
        %v1021 = vadd.f32 %v989, 1e-05
        %v1022 = vadd.f32 %v990, 1e-05
        %v1023 = vadd.f32 %v991, 1e-05
        %v1024 = vadd.f32 %v992, 1e-05
        %v1025 = vadd.f32 %v993, 1e-05
        %v1026 = vadd.f32 %v994, 1e-05
        %v1027 = vadd.f32 %v995, 1e-05
        %v1028 = vadd.f32 %v996, 1e-05
        %v1029 = vadd.f32 %v997, 1e-05
        %v1030 = vadd.f32 %v998, 1e-05
        %v1031 = vadd.f32 %v999, 1e-05
        %v1032 = vadd.f32 %v1000, 1e-05
        %v1033 = vadd.f32 %v1001, 1e-05
        %v1034 = vadd.f32 %v1002, 1e-05
        %v1035 = vadd.f32 %v1003, 1e-05
        %v1036 = vadd.f32 %v1004, 1e-05
        %v1037 = vrsqrt.pop %v1005
        %v1038 = vmul.f32 %v1037, %v1005
        %v1039 = vmul.f32 %v1038, %v1037
        %v1040 = vmul.f32 0.5, %v1039
        %v1041 = vsub.f32 1.5, %v1040
        %v1042 = vmul.f32 %v1037, %v1041
        %vm1043 = vweird.f32 %v1005
        %vm1044 = vweird.f32 %v1037
        %vm1045 = vmor %vm1043, %vm1044
        %v1046 = vsel %vm1045, %v1037, %v1042
        %v1047 = vrsqrt.pop %v1006
        %v1048 = vmul.f32 %v1047, %v1006
        %v1049 = vmul.f32 %v1048, %v1047
        %v1050 = vmul.f32 0.5, %v1049
        %v1051 = vsub.f32 1.5, %v1050
        %v1052 = vmul.f32 %v1047, %v1051
        %vm1053 = vweird.f32 %v1006
        %vm1054 = vweird.f32 %v1047
        %vm1055 = vmor %vm1053, %vm1054
        %v1056 = vsel %vm1055, %v1047, %v1052
        %v1057 = vrsqrt.pop %v1007
        %v1058 = vmul.f32 %v1057, %v1007
        %v1059 = vmul.f32 %v1058, %v1057
        %v1060 = vmul.f32 0.5, %v1059
        %v1061 = vsub.f32 1.5, %v1060
        %v1062 = vmul.f32 %v1057, %v1061
        %vm1063 = vweird.f32 %v1007
        %vm1064 = vweird.f32 %v1057
        %vm1065 = vmor %vm1063, %vm1064
        %v1066 = vsel %vm1065, %v1057, %v1062
        %v1067 = vrsqrt.pop %v1008
        %v1068 = vmul.f32 %v1067, %v1008
        %v1069 = vmul.f32 %v1068, %v1067
        %v1070 = vmul.f32 0.5, %v1069
        %v1071 = vsub.f32 1.5, %v1070
        %v1072 = vmul.f32 %v1067, %v1071
        %vm1073 = vweird.f32 %v1008
        %vm1074 = vweird.f32 %v1067
        %vm1075 = vmor %vm1073, %vm1074
        %v1076 = vsel %vm1075, %v1067, %v1072
        %v1077 = vrsqrt.pop %v1009
        %v1078 = vmul.f32 %v1077, %v1009
        %v1079 = vmul.f32 %v1078, %v1077
        %v1080 = vmul.f32 0.5, %v1079
        %v1081 = vsub.f32 1.5, %v1080
        %v1082 = vmul.f32 %v1077, %v1081
        %vm1083 = vweird.f32 %v1009
        %vm1084 = vweird.f32 %v1077
        %vm1085 = vmor %vm1083, %vm1084
        %v1086 = vsel %vm1085, %v1077, %v1082
        %v1087 = vrsqrt.pop %v1010
        %v1088 = vmul.f32 %v1087, %v1010
        %v1089 = vmul.f32 %v1088, %v1087
        %v1090 = vmul.f32 0.5, %v1089
        %v1091 = vsub.f32 1.5, %v1090
        %v1092 = vmul.f32 %v1087, %v1091
        %vm1093 = vweird.f32 %v1010
        %vm1094 = vweird.f32 %v1087
        %vm1095 = vmor %vm1093, %vm1094
        %v1096 = vsel %vm1095, %v1087, %v1092
        %v1097 = vrsqrt.pop %v1011
        %v1098 = vmul.f32 %v1097, %v1011
        %v1099 = vmul.f32 %v1098, %v1097
        %v1100 = vmul.f32 0.5, %v1099
        %v1101 = vsub.f32 1.5, %v1100
        %v1102 = vmul.f32 %v1097, %v1101
        %vm1103 = vweird.f32 %v1011
        %vm1104 = vweird.f32 %v1097
        %vm1105 = vmor %vm1103, %vm1104
        %v1106 = vsel %vm1105, %v1097, %v1102
        %v1107 = vrsqrt.pop %v1012
        %v1108 = vmul.f32 %v1107, %v1012
        %v1109 = vmul.f32 %v1108, %v1107
        %v1110 = vmul.f32 0.5, %v1109
        %v1111 = vsub.f32 1.5, %v1110
        %v1112 = vmul.f32 %v1107, %v1111
        %vm1113 = vweird.f32 %v1012
        %vm1114 = vweird.f32 %v1107
        %vm1115 = vmor %vm1113, %vm1114
        %v1116 = vsel %vm1115, %v1107, %v1112
        %v1117 = vrsqrt.pop %v1013
        %v1118 = vmul.f32 %v1117, %v1013
        %v1119 = vmul.f32 %v1118, %v1117
        %v1120 = vmul.f32 0.5, %v1119
        %v1121 = vsub.f32 1.5, %v1120
        %v1122 = vmul.f32 %v1117, %v1121
        %vm1123 = vweird.f32 %v1013
        %vm1124 = vweird.f32 %v1117
        %vm1125 = vmor %vm1123, %vm1124
        %v1126 = vsel %vm1125, %v1117, %v1122
        %v1127 = vrsqrt.pop %v1014
        %v1128 = vmul.f32 %v1127, %v1014
        %v1129 = vmul.f32 %v1128, %v1127
        %v1130 = vmul.f32 0.5, %v1129
        %v1131 = vsub.f32 1.5, %v1130
        %v1132 = vmul.f32 %v1127, %v1131
        %vm1133 = vweird.f32 %v1014
        %vm1134 = vweird.f32 %v1127
        %vm1135 = vmor %vm1133, %vm1134
        %v1136 = vsel %vm1135, %v1127, %v1132
        %v1137 = vrsqrt.pop %v1015
        %v1138 = vmul.f32 %v1137, %v1015
        %v1139 = vmul.f32 %v1138, %v1137
        %v1140 = vmul.f32 0.5, %v1139
        %v1141 = vsub.f32 1.5, %v1140
        %v1142 = vmul.f32 %v1137, %v1141
        %vm1143 = vweird.f32 %v1015
        %vm1144 = vweird.f32 %v1137
        %vm1145 = vmor %vm1143, %vm1144
        %v1146 = vsel %vm1145, %v1137, %v1142
        %v1147 = vrsqrt.pop %v1016
        %v1148 = vmul.f32 %v1147, %v1016
        %v1149 = vmul.f32 %v1148, %v1147
        %v1150 = vmul.f32 0.5, %v1149
        %v1151 = vsub.f32 1.5, %v1150
        %v1152 = vmul.f32 %v1147, %v1151
        %vm1153 = vweird.f32 %v1016
        %vm1154 = vweird.f32 %v1147
        %vm1155 = vmor %vm1153, %vm1154
        %v1156 = vsel %vm1155, %v1147, %v1152
        %v1157 = vrsqrt.pop %v1017
        %v1158 = vmul.f32 %v1157, %v1017
        %v1159 = vmul.f32 %v1158, %v1157
        %v1160 = vmul.f32 0.5, %v1159
        %v1161 = vsub.f32 1.5, %v1160
        %v1162 = vmul.f32 %v1157, %v1161
        %vm1163 = vweird.f32 %v1017
        %vm1164 = vweird.f32 %v1157
        %vm1165 = vmor %vm1163, %vm1164
        %v1166 = vsel %vm1165, %v1157, %v1162
        %v1167 = vrsqrt.pop %v1018
        %v1168 = vmul.f32 %v1167, %v1018
        %v1169 = vmul.f32 %v1168, %v1167
        %v1170 = vmul.f32 0.5, %v1169
        %v1171 = vsub.f32 1.5, %v1170
        %v1172 = vmul.f32 %v1167, %v1171
        %vm1173 = vweird.f32 %v1018
        %vm1174 = vweird.f32 %v1167
        %vm1175 = vmor %vm1173, %vm1174
        %v1176 = vsel %vm1175, %v1167, %v1172
        %v1177 = vrsqrt.pop %v1019
        %v1178 = vmul.f32 %v1177, %v1019
        %v1179 = vmul.f32 %v1178, %v1177
        %v1180 = vmul.f32 0.5, %v1179
        %v1181 = vsub.f32 1.5, %v1180
        %v1182 = vmul.f32 %v1177, %v1181
        %vm1183 = vweird.f32 %v1019
        %vm1184 = vweird.f32 %v1177
        %vm1185 = vmor %vm1183, %vm1184
        %v1186 = vsel %vm1185, %v1177, %v1182
        %v1187 = vrsqrt.pop %v1020
        %v1188 = vmul.f32 %v1187, %v1020
        %v1189 = vmul.f32 %v1188, %v1187
        %v1190 = vmul.f32 0.5, %v1189
        %v1191 = vsub.f32 1.5, %v1190
        %v1192 = vmul.f32 %v1187, %v1191
        %vm1193 = vweird.f32 %v1020
        %vm1194 = vweird.f32 %v1187
        %vm1195 = vmor %vm1193, %vm1194
        %v1196 = vsel %vm1195, %v1187, %v1192
        %v1197 = vrsqrt.pop %v1021
        %v1198 = vmul.f32 %v1197, %v1021
        %v1199 = vmul.f32 %v1198, %v1197
        %v1200 = vmul.f32 0.5, %v1199
        %v1201 = vsub.f32 1.5, %v1200
        %v1202 = vmul.f32 %v1197, %v1201
        %vm1203 = vweird.f32 %v1021
        %vm1204 = vweird.f32 %v1197
        %vm1205 = vmor %vm1203, %vm1204
        %v1206 = vsel %vm1205, %v1197, %v1202
        %v1207 = vrsqrt.pop %v1022
        %v1208 = vmul.f32 %v1207, %v1022
        %v1209 = vmul.f32 %v1208, %v1207
        %v1210 = vmul.f32 0.5, %v1209
        %v1211 = vsub.f32 1.5, %v1210
        %v1212 = vmul.f32 %v1207, %v1211
        %vm1213 = vweird.f32 %v1022
        %vm1214 = vweird.f32 %v1207
        %vm1215 = vmor %vm1213, %vm1214
        %v1216 = vsel %vm1215, %v1207, %v1212
        %v1217 = vrsqrt.pop %v1023
        %v1218 = vmul.f32 %v1217, %v1023
        %v1219 = vmul.f32 %v1218, %v1217
        %v1220 = vmul.f32 0.5, %v1219
        %v1221 = vsub.f32 1.5, %v1220
        %v1222 = vmul.f32 %v1217, %v1221
        %vm1223 = vweird.f32 %v1023
        %vm1224 = vweird.f32 %v1217
        %vm1225 = vmor %vm1223, %vm1224
        %v1226 = vsel %vm1225, %v1217, %v1222
        %v1227 = vrsqrt.pop %v1024
        %v1228 = vmul.f32 %v1227, %v1024
        %v1229 = vmul.f32 %v1228, %v1227
        %v1230 = vmul.f32 0.5, %v1229
        %v1231 = vsub.f32 1.5, %v1230
        %v1232 = vmul.f32 %v1227, %v1231
        %vm1233 = vweird.f32 %v1024
        %vm1234 = vweird.f32 %v1227
        %vm1235 = vmor %vm1233, %vm1234
        %v1236 = vsel %vm1235, %v1227, %v1232
        %v1237 = vrsqrt.pop %v1025
        %v1238 = vmul.f32 %v1237, %v1025
        %v1239 = vmul.f32 %v1238, %v1237
        %v1240 = vmul.f32 0.5, %v1239
        %v1241 = vsub.f32 1.5, %v1240
        %v1242 = vmul.f32 %v1237, %v1241
        %vm1243 = vweird.f32 %v1025
        %vm1244 = vweird.f32 %v1237
        %vm1245 = vmor %vm1243, %vm1244
        %v1246 = vsel %vm1245, %v1237, %v1242
        %v1247 = vrsqrt.pop %v1026
        %v1248 = vmul.f32 %v1247, %v1026
        %v1249 = vmul.f32 %v1248, %v1247
        %v1250 = vmul.f32 0.5, %v1249
        %v1251 = vsub.f32 1.5, %v1250
        %v1252 = vmul.f32 %v1247, %v1251
        %vm1253 = vweird.f32 %v1026
        %vm1254 = vweird.f32 %v1247
        %vm1255 = vmor %vm1253, %vm1254
        %v1256 = vsel %vm1255, %v1247, %v1252
        %v1257 = vrsqrt.pop %v1027
        %v1258 = vmul.f32 %v1257, %v1027
        %v1259 = vmul.f32 %v1258, %v1257
        %v1260 = vmul.f32 0.5, %v1259
        %v1261 = vsub.f32 1.5, %v1260
        %v1262 = vmul.f32 %v1257, %v1261
        %vm1263 = vweird.f32 %v1027
        %vm1264 = vweird.f32 %v1257
        %vm1265 = vmor %vm1263, %vm1264
        %v1266 = vsel %vm1265, %v1257, %v1262
        %v1267 = vrsqrt.pop %v1028
        %v1268 = vmul.f32 %v1267, %v1028
        %v1269 = vmul.f32 %v1268, %v1267
        %v1270 = vmul.f32 0.5, %v1269
        %v1271 = vsub.f32 1.5, %v1270
        %v1272 = vmul.f32 %v1267, %v1271
        %vm1273 = vweird.f32 %v1028
        %vm1274 = vweird.f32 %v1267
        %vm1275 = vmor %vm1273, %vm1274
        %v1276 = vsel %vm1275, %v1267, %v1272
        %v1277 = vrsqrt.pop %v1029
        %v1278 = vmul.f32 %v1277, %v1029
        %v1279 = vmul.f32 %v1278, %v1277
        %v1280 = vmul.f32 0.5, %v1279
        %v1281 = vsub.f32 1.5, %v1280
        %v1282 = vmul.f32 %v1277, %v1281
        %vm1283 = vweird.f32 %v1029
        %vm1284 = vweird.f32 %v1277
        %vm1285 = vmor %vm1283, %vm1284
        %v1286 = vsel %vm1285, %v1277, %v1282
        %v1287 = vrsqrt.pop %v1030
        %v1288 = vmul.f32 %v1287, %v1030
        %v1289 = vmul.f32 %v1288, %v1287
        %v1290 = vmul.f32 0.5, %v1289
        %v1291 = vsub.f32 1.5, %v1290
        %v1292 = vmul.f32 %v1287, %v1291
        %vm1293 = vweird.f32 %v1030
        %vm1294 = vweird.f32 %v1287
        %vm1295 = vmor %vm1293, %vm1294
        %v1296 = vsel %vm1295, %v1287, %v1292
        %v1297 = vrsqrt.pop %v1031
        %v1298 = vmul.f32 %v1297, %v1031
        %v1299 = vmul.f32 %v1298, %v1297
        %v1300 = vmul.f32 0.5, %v1299
        %v1301 = vsub.f32 1.5, %v1300
        %v1302 = vmul.f32 %v1297, %v1301
        %vm1303 = vweird.f32 %v1031
        %vm1304 = vweird.f32 %v1297
        %vm1305 = vmor %vm1303, %vm1304
        %v1306 = vsel %vm1305, %v1297, %v1302
        %v1307 = vrsqrt.pop %v1032
        %v1308 = vmul.f32 %v1307, %v1032
        %v1309 = vmul.f32 %v1308, %v1307
        %v1310 = vmul.f32 0.5, %v1309
        %v1311 = vsub.f32 1.5, %v1310
        %v1312 = vmul.f32 %v1307, %v1311
        %vm1313 = vweird.f32 %v1032
        %vm1314 = vweird.f32 %v1307
        %vm1315 = vmor %vm1313, %vm1314
        %v1316 = vsel %vm1315, %v1307, %v1312
        %v1317 = vrsqrt.pop %v1033
        %v1318 = vmul.f32 %v1317, %v1033
        %v1319 = vmul.f32 %v1318, %v1317
        %v1320 = vmul.f32 0.5, %v1319
        %v1321 = vsub.f32 1.5, %v1320
        %v1322 = vmul.f32 %v1317, %v1321
        %vm1323 = vweird.f32 %v1033
        %vm1324 = vweird.f32 %v1317
        %vm1325 = vmor %vm1323, %vm1324
        %v1326 = vsel %vm1325, %v1317, %v1322
        %v1327 = vrsqrt.pop %v1034
        %v1328 = vmul.f32 %v1327, %v1034
        %v1329 = vmul.f32 %v1328, %v1327
        %v1330 = vmul.f32 0.5, %v1329
        %v1331 = vsub.f32 1.5, %v1330
        %v1332 = vmul.f32 %v1327, %v1331
        %vm1333 = vweird.f32 %v1034
        %vm1334 = vweird.f32 %v1327
        %vm1335 = vmor %vm1333, %vm1334
        %v1336 = vsel %vm1335, %v1327, %v1332
        %v1337 = vrsqrt.pop %v1035
        %v1338 = vmul.f32 %v1337, %v1035
        %v1339 = vmul.f32 %v1338, %v1337
        %v1340 = vmul.f32 0.5, %v1339
        %v1341 = vsub.f32 1.5, %v1340
        %v1342 = vmul.f32 %v1337, %v1341
        %vm1343 = vweird.f32 %v1035
        %vm1344 = vweird.f32 %v1337
        %vm1345 = vmor %vm1343, %vm1344
        %v1346 = vsel %vm1345, %v1337, %v1342
        %v1347 = vrsqrt.pop %v1036
        %v1348 = vmul.f32 %v1347, %v1036
        %v1349 = vmul.f32 %v1348, %v1347
        %v1350 = vmul.f32 0.5, %v1349
        %v1351 = vsub.f32 1.5, %v1350
        %v1352 = vmul.f32 %v1347, %v1351
        %vm1353 = vweird.f32 %v1036
        %vm1354 = vweird.f32 %v1347
        %vm1355 = vmor %vm1353, %vm1354
        %v1356 = vsel %vm1355, %v1347, %v1352
        %v1357 = vmul.f32 %v685, %v1046
        %v1358 = vmul.f32 %v686, %v1056
        %v1359 = vmul.f32 %v687, %v1066
        %v1360 = vmul.f32 %v688, %v1076
        %v1361 = vmul.f32 %v689, %v1086
        %v1362 = vmul.f32 %v690, %v1096
        %v1363 = vmul.f32 %v691, %v1106
        %v1364 = vmul.f32 %v692, %v1116
        %v1365 = vmul.f32 %v693, %v1126
        %v1366 = vmul.f32 %v694, %v1136
        %v1367 = vmul.f32 %v695, %v1146
        %v1368 = vmul.f32 %v696, %v1156
        %v1369 = vmul.f32 %v697, %v1166
        %v1370 = vmul.f32 %v698, %v1176
        %v1371 = vmul.f32 %v699, %v1186
        %v1372 = vmul.f32 %v700, %v1196
        %v1373 = vmul.f32 %v701, %v1206
        %v1374 = vmul.f32 %v702, %v1216
        %v1375 = vmul.f32 %v703, %v1226
        %v1376 = vmul.f32 %v704, %v1236
        %v1377 = vmul.f32 %v705, %v1246
        %v1378 = vmul.f32 %v706, %v1256
        %v1379 = vmul.f32 %v707, %v1266
        %v1380 = vmul.f32 %v708, %v1276
        %v1381 = vmul.f32 %v709, %v1286
        %v1382 = vmul.f32 %v710, %v1296
        %v1383 = vmul.f32 %v711, %v1306
        %v1384 = vmul.f32 %v712, %v1316
        %v1385 = vmul.f32 %v713, %v1326
        %v1386 = vmul.f32 %v714, %v1336
        %v1387 = vmul.f32 %v715, %v1346
        %v1388 = vmul.f32 %v716, %v1356
        %v1389 = vpack.c.bf16 %v1358, %v1357
        %v1390 = vpack.c.bf16 %v1360, %v1359
        %v1391 = vpack.c.bf16 %v1362, %v1361
        %v1392 = vpack.c.bf16 %v1364, %v1363
        %v1393 = vpack.c.bf16 %v1366, %v1365
        %v1394 = vpack.c.bf16 %v1368, %v1367
        %v1395 = vpack.c.bf16 %v1370, %v1369
        %v1396 = vpack.c.bf16 %v1372, %v1371
        %v1397 = vpack.c.bf16 %v1374, %v1373
        %v1398 = vpack.c.bf16 %v1376, %v1375
        %v1399 = vpack.c.bf16 %v1378, %v1377
        %v1400 = vpack.c.bf16 %v1380, %v1379
        %v1401 = vpack.c.bf16 %v1382, %v1381
        %v1402 = vpack.c.bf16 %v1384, %v1383
        %v1403 = vpack.c.bf16 %v1386, %v1385
        %v1404 = vpack.c.bf16 %v1388, %v1387
        %v1405 = vld [vmem:[%s354] sm:$0xf]
        %v1406 = vld [vmem:[%s354 + $0x4] sm:$0xf]
        %v1407 = vld [vmem:[%s354 + $0x8] sm:$0xf]
        %v1408 = vld [vmem:[%s354 + $0xc] sm:$0xf]
        %v1409 = vld [vmem:[%s354 + $0x10] sm:$0xf]
        %v1410 = vld [vmem:[%s354 + $0x14] sm:$0xf]
        %v1411 = vld [vmem:[%s354 + $0x18] sm:$0xf]
        %v1412 = vld [vmem:[%s354 + $0x1c] sm:$0xf]
        %v1413 = vld [vmem:[%s354 + $0x20] sm:$0xf]
        %v1414 = vld [vmem:[%s354 + $0x24] sm:$0xf]
        %v1415 = vld [vmem:[%s354 + $0x28] sm:$0xf]
        %v1416 = vld [vmem:[%s354 + $0x2c] sm:$0xf]
        %v1417 = vld [vmem:[%s354 + $0x30] sm:$0xf]
        %v1418 = vld [vmem:[%s354 + $0x34] sm:$0xf]
        %v1419 = vld [vmem:[%s354 + $0x38] sm:$0xf]
        %v1420 = vld [vmem:[%s354 + $0x3c] sm:$0xf]
        %v1421 = vld [vmem:[%s354 + $0x40] sm:$0xf]
        %v1422 = vld [vmem:[%s354 + $0x44] sm:$0xf]
        %v1423 = vld [vmem:[%s354 + $0x48] sm:$0xf]
        %v1424 = vld [vmem:[%s354 + $0x4c] sm:$0xf]
        %v1425 = vld [vmem:[%s354 + $0x50] sm:$0xf]
        %v1426 = vld [vmem:[%s354 + $0x54] sm:$0xf]
        %v1427 = vld [vmem:[%s354 + $0x58] sm:$0xf]
        %v1428 = vld [vmem:[%s354 + $0x5c] sm:$0xf]
        %v1429 = vld [vmem:[%s354 + $0x60] sm:$0xf]
        %v1430 = vld [vmem:[%s354 + $0x64] sm:$0xf]
        %v1431 = vld [vmem:[%s354 + $0x68] sm:$0xf]
        %v1432 = vld [vmem:[%s354 + $0x6c] sm:$0xf]
        %v1433 = vld [vmem:[%s354 + $0x70] sm:$0xf]
        %v1434 = vld [vmem:[%s354 + $0x74] sm:$0xf]
        %v1435 = vld [vmem:[%s354 + $0x78] sm:$0xf]
        %v1436 = vld [vmem:[%s354 + $0x7c] sm:$0xf]
        %v1437 = vld [vmem:[%s2] sm:$0xf]
        %v1438 = vld [vmem:[%s2 + $0x4] sm:$0xf]
        %v1439 = vld [vmem:[%s2 + $0x8] sm:$0xf]
        %v1440 = vld [vmem:[%s2 + $0xc] sm:$0xf]
        %v1441 = vld [vmem:[%s3] sm:$0x1]
        %v1443 = vperm.slane %v1441, 0
        %v1449 = vunpack.c.l.b16 %v1437
        %v1450 = vunpack.c.l.b16 %v1438
        %v1451 = vunpack.c.l.b16 %v1439
        %v1452 = vunpack.c.l.b16 %v1440
        %v1453 = vpack.c.b16 %v1450, %v1449
        %v1454 = vpack.c.b16 %v1452, %v1451
        %v1458 = vsel %vm421, %v1389, 0
        %v1461 = vsel %vm421, %v1390, 0
        %v1464 = vsel %vm421, %v1391, 0
        %v1467 = vsel %vm421, %v1392, 0
        %v1470 = vsel %vm421, %v1393, 0
        %v1473 = vsel %vm421, %v1394, 0
        %v1476 = vsel %vm421, %v1395, 0
        %v1479 = vsel %vm421, %v1396, 0
        %v1482 = vsel %vm421, %v1397, 0
        %v1485 = vsel %vm421, %v1398, 0
        %v1488 = vsel %vm421, %v1399, 0
        %v1491 = vsel %vm421, %v1400, 0
        %v1494 = vsel %vm421, %v1401, 0
        %v1497 = vsel %vm421, %v1402, 0
        %v1500 = vsel %vm421, %v1403, 0
        %v1503 = vsel %vm421, %v1404, 0
        %1505 = vmatpush.bf16.msra.mxu0 0
        %1506 = vmatpush.bf16.msra.mxu0 0
        %1507 = vmatpush.bf16.msra.mxu0 0
        %1508 = vmatpush.bf16.msra.mxu0 0
        %1509 = vmatpush.bf16.msra.mxu0 0
        %1510 = vmatpush.bf16.msra.mxu0 0
        %1511 = vmatpush.bf16.msra.mxu0 %v1454
        %1512 = vmatpush.bf16.msra.mxu0 %v1453
        %1513 = vmatmul.bf16.gmra.mxu0 %v1458
        %v1514 = vpop.f32.mrf.mxu0
        %v1515 = vadd.f32 %v1443, %v1514
        %v1516 = vpop.f32.mrf.mxu0
        %v1517 = vadd.f32 %v1443, %v1516
        %1518 = vmatmul.bf16.gmra.mxu0 %v1461
        %v1519 = vpop.f32.mrf.mxu0
        %v1520 = vadd.f32 %v1443, %v1519
        %v1521 = vpop.f32.mrf.mxu0
        %v1522 = vadd.f32 %v1443, %v1521
        %1523 = vmatmul.bf16.gmra.mxu0 %v1464
        %v1524 = vpop.f32.mrf.mxu0
        %v1525 = vadd.f32 %v1443, %v1524
        %v1526 = vpop.f32.mrf.mxu0
        %v1527 = vadd.f32 %v1443, %v1526
        %1528 = vmatmul.bf16.gmra.mxu0 %v1467
        %v1529 = vpop.f32.mrf.mxu0
        %v1530 = vadd.f32 %v1443, %v1529
        %v1531 = vpop.f32.mrf.mxu0
        %v1532 = vadd.f32 %v1443, %v1531
        %1533 = vmatmul.bf16.gmra.mxu0 %v1470
        %v1534 = vpop.f32.mrf.mxu0
        %v1535 = vadd.f32 %v1443, %v1534
        %v1536 = vpop.f32.mrf.mxu0
        %v1537 = vadd.f32 %v1443, %v1536
        %1538 = vmatmul.bf16.gmra.mxu0 %v1473
        %v1539 = vpop.f32.mrf.mxu0
        %v1540 = vadd.f32 %v1443, %v1539
        %v1541 = vpop.f32.mrf.mxu0
        %v1542 = vadd.f32 %v1443, %v1541
        %1543 = vmatmul.bf16.gmra.mxu0 %v1476
        %v1544 = vpop.f32.mrf.mxu0
        %v1545 = vadd.f32 %v1443, %v1544
        %v1546 = vpop.f32.mrf.mxu0
        %v1547 = vadd.f32 %v1443, %v1546
        %1548 = vmatmul.bf16.gmra.mxu0 %v1479
        %v1549 = vpop.f32.mrf.mxu0
        %v1550 = vadd.f32 %v1443, %v1549
        %v1551 = vpop.f32.mrf.mxu0
        %v1552 = vadd.f32 %v1443, %v1551
        %1553 = vmatmul.bf16.gmra.mxu0 %v1482
        %v1554 = vpop.f32.mrf.mxu0
        %v1555 = vadd.f32 %v1443, %v1554
        %v1556 = vpop.f32.mrf.mxu0
        %v1557 = vadd.f32 %v1443, %v1556
        %1558 = vmatmul.bf16.gmra.mxu0 %v1485
        %v1559 = vpop.f32.mrf.mxu0
        %v1560 = vadd.f32 %v1443, %v1559
        %v1561 = vpop.f32.mrf.mxu0
        %v1562 = vadd.f32 %v1443, %v1561
        %1563 = vmatmul.bf16.gmra.mxu0 %v1488
        %v1564 = vpop.f32.mrf.mxu0
        %v1565 = vadd.f32 %v1443, %v1564
        %v1566 = vpop.f32.mrf.mxu0
        %v1567 = vadd.f32 %v1443, %v1566
        %1568 = vmatmul.bf16.gmra.mxu0 %v1491
        %v1569 = vpop.f32.mrf.mxu0
        %v1570 = vadd.f32 %v1443, %v1569
        %v1571 = vpop.f32.mrf.mxu0
        %v1572 = vadd.f32 %v1443, %v1571
        %1573 = vmatmul.bf16.gmra.mxu0 %v1494
        %v1574 = vpop.f32.mrf.mxu0
        %v1575 = vadd.f32 %v1443, %v1574
        %v1576 = vpop.f32.mrf.mxu0
        %v1577 = vadd.f32 %v1443, %v1576
        %1578 = vmatmul.bf16.gmra.mxu0 %v1497
        %v1579 = vpop.f32.mrf.mxu0
        %v1580 = vadd.f32 %v1443, %v1579
        %v1581 = vpop.f32.mrf.mxu0
        %v1582 = vadd.f32 %v1443, %v1581
        %1583 = vmatmul.bf16.gmra.mxu0 %v1500
        %v1584 = vpop.f32.mrf.mxu0
        %v1585 = vadd.f32 %v1443, %v1584
        %v1586 = vpop.f32.mrf.mxu0
        %v1587 = vadd.f32 %v1443, %v1586
        %1588 = vmatmul.bf16.gmra.mxu0 %v1503
        %v1589 = vpop.f32.mrf.mxu0
        %v1590 = vadd.f32 %v1443, %v1589
        %v1591 = vpop.f32.mrf.mxu0
        %v1592 = vadd.f32 %v1443, %v1591
        %1593 = vdwg.mxu0
        %v1594 = vmax.f32 %v1515, 0.0
        %v1595 = vmax.f32 %v1517, 0.0
        %v1596 = vmax.f32 %v1520, 0.0
        %v1597 = vmax.f32 %v1522, 0.0
        %v1598 = vmax.f32 %v1525, 0.0
        %v1599 = vmax.f32 %v1527, 0.0
        %v1600 = vmax.f32 %v1530, 0.0
        %v1601 = vmax.f32 %v1532, 0.0
        %v1602 = vmax.f32 %v1535, 0.0
        %v1603 = vmax.f32 %v1537, 0.0
        %v1604 = vmax.f32 %v1540, 0.0
        %v1605 = vmax.f32 %v1542, 0.0
        %v1606 = vmax.f32 %v1545, 0.0
        %v1607 = vmax.f32 %v1547, 0.0
        %v1608 = vmax.f32 %v1550, 0.0
        %v1609 = vmax.f32 %v1552, 0.0
        %v1610 = vmax.f32 %v1555, 0.0
        %v1611 = vmax.f32 %v1557, 0.0
        %v1612 = vmax.f32 %v1560, 0.0
        %v1613 = vmax.f32 %v1562, 0.0
        %v1614 = vmax.f32 %v1565, 0.0
        %v1615 = vmax.f32 %v1567, 0.0
        %v1616 = vmax.f32 %v1570, 0.0
        %v1617 = vmax.f32 %v1572, 0.0
        %v1618 = vmax.f32 %v1575, 0.0
        %v1619 = vmax.f32 %v1577, 0.0
        %v1620 = vmax.f32 %v1580, 0.0
        %v1621 = vmax.f32 %v1582, 0.0
        %v1622 = vmax.f32 %v1585, 0.0
        %v1623 = vmax.f32 %v1587, 0.0
        %v1624 = vmax.f32 %v1590, 0.0
        %v1625 = vmax.f32 %v1592, 0.0
        %v1626 = vpack.c.bf16 %v1595, %v1594
        %v1627 = vpack.c.bf16 %v1597, %v1596
        %v1628 = vpack.c.bf16 %v1599, %v1598
        %v1629 = vpack.c.bf16 %v1601, %v1600
        %v1630 = vpack.c.bf16 %v1603, %v1602
        %v1631 = vpack.c.bf16 %v1605, %v1604
        %v1632 = vpack.c.bf16 %v1607, %v1606
        %v1633 = vpack.c.bf16 %v1609, %v1608
        %v1634 = vpack.c.bf16 %v1611, %v1610
        %v1635 = vpack.c.bf16 %v1613, %v1612
        %v1636 = vpack.c.bf16 %v1615, %v1614
        %v1637 = vpack.c.bf16 %v1617, %v1616
        %v1638 = vpack.c.bf16 %v1619, %v1618
        %v1639 = vpack.c.bf16 %v1621, %v1620
        %v1640 = vpack.c.bf16 %v1623, %v1622
        %v1641 = vpack.c.bf16 %v1625, %v1624
        %v1642 = vld [vmem:[%s4] sm:$0xf]
        %v1643 = vld [vmem:[%s4 + $0x4] sm:$0xf]
        %v1644 = vld [vmem:[%s4 + $0x8] sm:$0xf]
        %v1645 = vld [vmem:[%s4 + $0xc] sm:$0xf]
        %v1646 = vld [vmem:[%s4 + $0x10] sm:$0xf]
        %v1647 = vld [vmem:[%s4 + $0x14] sm:$0xf]
        %v1648 = vld [vmem:[%s4 + $0x18] sm:$0xf]
        %v1649 = vld [vmem:[%s4 + $0x1c] sm:$0xf]
        %v1650 = vld [vmem:[%s5] sm:$0xf]
        %v1683 = vunpack.c.l.b16 %v1405
        %v1684 = vunpack.c.l.b16 %v1406
        %v1685 = vunpack.c.l.b16 %v1407
        %v1686 = vunpack.c.l.b16 %v1408
        %v1687 = vunpack.c.l.b16 %v1409
        %v1688 = vunpack.c.l.b16 %v1410
        %v1689 = vunpack.c.l.b16 %v1411
        %v1690 = vunpack.c.l.b16 %v1412
        %v1691 = vunpack.c.l.b16 %v1413
        %v1692 = vunpack.c.l.b16 %v1414
        %v1693 = vunpack.c.l.b16 %v1415
        %v1694 = vunpack.c.l.b16 %v1416
        %v1695 = vunpack.c.l.b16 %v1417
        %v1696 = vunpack.c.l.b16 %v1418
        %v1697 = vunpack.c.l.b16 %v1419
        %v1698 = vunpack.c.l.b16 %v1420
        %v1699 = vunpack.c.l.b16 %v1421
        %v1700 = vunpack.c.l.b16 %v1422
        %v1701 = vunpack.c.l.b16 %v1423
        %v1702 = vunpack.c.l.b16 %v1424
        %v1703 = vunpack.c.l.b16 %v1425
        %v1704 = vunpack.c.l.b16 %v1426
        %v1705 = vunpack.c.l.b16 %v1427
        %v1706 = vunpack.c.l.b16 %v1428
        %v1707 = vunpack.c.l.b16 %v1429
        %v1708 = vunpack.c.l.b16 %v1430
        %v1709 = vunpack.c.l.b16 %v1431
        %v1710 = vunpack.c.l.b16 %v1432
        %v1711 = vunpack.c.l.b16 %v1433
        %v1712 = vunpack.c.l.b16 %v1434
        %v1713 = vunpack.c.l.b16 %v1435
        %v1714 = vunpack.c.l.b16 %v1436
        %v1715 = vpack.c.b16 %v1684, %v1683
        %v1716 = vpack.c.b16 %v1686, %v1685
        %v1717 = vpack.c.b16 %v1688, %v1687
        %v1718 = vpack.c.b16 %v1690, %v1689
        %v1719 = vpack.c.b16 %v1692, %v1691
        %v1720 = vpack.c.b16 %v1694, %v1693
        %v1721 = vpack.c.b16 %v1696, %v1695
        %v1722 = vpack.c.b16 %v1698, %v1697
        %v1723 = vpack.c.b16 %v1700, %v1699
        %v1724 = vpack.c.b16 %v1702, %v1701
        %v1725 = vpack.c.b16 %v1704, %v1703
        %v1726 = vpack.c.b16 %v1706, %v1705
        %v1727 = vpack.c.b16 %v1708, %v1707
        %v1728 = vpack.c.b16 %v1710, %v1709
        %v1729 = vpack.c.b16 %v1712, %v1711
        %v1730 = vpack.c.b16 %v1714, %v1713
        %vm1731 = vcmask 64512
        %v1733 = vsel %vm1731, %v1715, 0
        %v1736 = vsel %vm1731, %v1716, 0
        %v1739 = vsel %vm1731, %v1717, 0
        %v1742 = vsel %vm1731, %v1718, 0
        %v1745 = vsel %vm1731, %v1719, 0
        %v1748 = vsel %vm1731, %v1720, 0
        %v1751 = vsel %vm1731, %v1721, 0
        %v1754 = vsel %vm1731, %v1722, 0
        %v1757 = vsel %vm1731, %v1723, 0
        %v1760 = vsel %vm1731, %v1724, 0
        %v1763 = vsel %vm1731, %v1725, 0
        %v1766 = vsel %vm1731, %v1726, 0
        %v1769 = vsel %vm1731, %v1727, 0
        %v1772 = vsel %vm1731, %v1728, 0
        %v1775 = vsel %vm1731, %v1729, 0
        %v1778 = vsel %vm1731, %v1730, 0
        %vm1780 = vcmask 1043456
        %v1782 = vsel %vm1780, %v1650, 0
        %1784 = vmatpush.bf16.msra.mxu0 0
        %1785 = vmatpush.bf16.msra.mxu0 0
        %1786 = vmatpush.bf16.msra.mxu0 0
        %1787 = vmatpush.bf16.msra.mxu0 0
        %1788 = vmatpush.bf16.msra.mxu0 0
        %1789 = vmatpush.bf16.msra.mxu0 0
        %1790 = vmatpush.bf16.msra.mxu0 0
        %1791 = vmatpush.bf16.msra.mxu0 %v1782
        %1792 = vmatmul.bf16.gmra.mxu0 %v1733
        %v1793 = vpop.f32.mrf.mxu0
        %v1794 = vadd.f32 0.0, %v1793
        %v1795 = vpop.f32.mrf.mxu0
        %v1796 = vadd.f32 0.0, %v1795
        %1797 = vmatmul.bf16.gmra.mxu0 %v1736
        %v1798 = vpop.f32.mrf.mxu0
        %v1799 = vadd.f32 0.0, %v1798
        %v1800 = vpop.f32.mrf.mxu0
        %v1801 = vadd.f32 0.0, %v1800
        %1802 = vmatmul.bf16.gmra.mxu0 %v1739
        %v1803 = vpop.f32.mrf.mxu0
        %v1804 = vadd.f32 0.0, %v1803
        %v1805 = vpop.f32.mrf.mxu0
        %v1806 = vadd.f32 0.0, %v1805
        %1807 = vmatmul.bf16.gmra.mxu0 %v1742
        %v1808 = vpop.f32.mrf.mxu0
        %v1809 = vadd.f32 0.0, %v1808
        %v1810 = vpop.f32.mrf.mxu0
        %v1811 = vadd.f32 0.0, %v1810
        %1812 = vmatmul.bf16.gmra.mxu0 %v1745
        %v1813 = vpop.f32.mrf.mxu0
        %v1814 = vadd.f32 0.0, %v1813
        %v1815 = vpop.f32.mrf.mxu0
        %v1816 = vadd.f32 0.0, %v1815
        %1817 = vmatmul.bf16.gmra.mxu0 %v1748
        %v1818 = vpop.f32.mrf.mxu0
        %v1819 = vadd.f32 0.0, %v1818
        %v1820 = vpop.f32.mrf.mxu0
        %v1821 = vadd.f32 0.0, %v1820
        %1822 = vmatmul.bf16.gmra.mxu0 %v1751
        %v1823 = vpop.f32.mrf.mxu0
        %v1824 = vadd.f32 0.0, %v1823
        %v1825 = vpop.f32.mrf.mxu0
        %v1826 = vadd.f32 0.0, %v1825
        %1827 = vmatmul.bf16.gmra.mxu0 %v1754
        %v1828 = vpop.f32.mrf.mxu0
        %v1829 = vadd.f32 0.0, %v1828
        %v1830 = vpop.f32.mrf.mxu0
        %v1831 = vadd.f32 0.0, %v1830
        %1832 = vmatmul.bf16.gmra.mxu0 %v1757
        %v1833 = vpop.f32.mrf.mxu0
        %v1834 = vadd.f32 0.0, %v1833
        %v1835 = vpop.f32.mrf.mxu0
        %v1836 = vadd.f32 0.0, %v1835
        %1837 = vmatmul.bf16.gmra.mxu0 %v1760
        %v1838 = vpop.f32.mrf.mxu0
        %v1839 = vadd.f32 0.0, %v1838
        %v1840 = vpop.f32.mrf.mxu0
        %v1841 = vadd.f32 0.0, %v1840
        %1842 = vmatmul.bf16.gmra.mxu0 %v1763
        %v1843 = vpop.f32.mrf.mxu0
        %v1844 = vadd.f32 0.0, %v1843
        %v1845 = vpop.f32.mrf.mxu0
        %v1846 = vadd.f32 0.0, %v1845
        %1847 = vmatmul.bf16.gmra.mxu0 %v1766
        %v1848 = vpop.f32.mrf.mxu0
        %v1849 = vadd.f32 0.0, %v1848
        %v1850 = vpop.f32.mrf.mxu0
        %v1851 = vadd.f32 0.0, %v1850
        %1852 = vmatmul.bf16.gmra.mxu0 %v1769
        %v1853 = vpop.f32.mrf.mxu0
        %v1854 = vadd.f32 0.0, %v1853
        %v1855 = vpop.f32.mrf.mxu0
        %v1856 = vadd.f32 0.0, %v1855
        %1857 = vmatmul.bf16.gmra.mxu0 %v1772
        %v1858 = vpop.f32.mrf.mxu0
        %v1859 = vadd.f32 0.0, %v1858
        %v1860 = vpop.f32.mrf.mxu0
        %v1861 = vadd.f32 0.0, %v1860
        %1862 = vmatmul.bf16.gmra.mxu0 %v1775
        %v1863 = vpop.f32.mrf.mxu0
        %v1864 = vadd.f32 0.0, %v1863
        %v1865 = vpop.f32.mrf.mxu0
        %v1866 = vadd.f32 0.0, %v1865
        %1867 = vmatmul.bf16.gmra.mxu0 %v1778
        %v1868 = vpop.f32.mrf.mxu0
        %v1869 = vadd.f32 0.0, %v1868
        %v1870 = vpop.f32.mrf.mxu0
        %v1871 = vadd.f32 0.0, %v1870
        %1872 = vdwg.mxu0
        %v1881 = vunpack.c.l.b16 %v1642
        %v1882 = vunpack.c.l.b16 %v1643
        %v1883 = vunpack.c.l.b16 %v1644
        %v1884 = vunpack.c.l.b16 %v1645
        %v1885 = vunpack.c.l.b16 %v1646
        %v1886 = vunpack.c.l.b16 %v1647
        %v1887 = vunpack.c.l.b16 %v1648
        %v1888 = vunpack.c.l.b16 %v1649
        %v1889 = vpack.c.b16 %v1882, %v1881
        %v1890 = vpack.c.b16 %v1884, %v1883
        %v1891 = vpack.c.b16 %v1886, %v1885
        %v1892 = vpack.c.b16 %v1888, %v1887
        %vm1897 = vcmask 523264
        %v1899 = vsel %vm1897, %v1626, 0
        %v1902 = vsel %vm1897, %v1627, 0
        %v1905 = vsel %vm1897, %v1628, 0
        %v1908 = vsel %vm1897, %v1629, 0
        %v1911 = vsel %vm1897, %v1630, 0
        %v1914 = vsel %vm1897, %v1631, 0
        %v1917 = vsel %vm1897, %v1632, 0
        %v1920 = vsel %vm1897, %v1633, 0
        %v1923 = vsel %vm1897, %v1634, 0
        %v1926 = vsel %vm1897, %v1635, 0
        %v1929 = vsel %vm1897, %v1636, 0
        %v1932 = vsel %vm1897, %v1637, 0
        %v1935 = vsel %vm1897, %v1638, 0
        %v1938 = vsel %vm1897, %v1639, 0
        %v1941 = vsel %vm1897, %v1640, 0
        %v1944 = vsel %vm1897, %v1641, 0
        %1946 = vmatpush.bf16.msra.mxu0 0
        %1947 = vmatpush.bf16.msra.mxu0 0
        %1948 = vmatpush.bf16.msra.mxu0 0
        %1949 = vmatpush.bf16.msra.mxu0 0
        %1950 = vmatpush.bf16.msra.mxu0 %v1892
        %1951 = vmatpush.bf16.msra.mxu0 %v1891
        %1952 = vmatpush.bf16.msra.mxu0 %v1890
        %1953 = vmatpush.bf16.msra.mxu0 %v1889
        %1954 = vmatmul.bf16.gmra.mxu0 %v1899
        %v1955 = vpop.f32.mrf.mxu0
        %v1956 = vadd.f32 %v1794, %v1955
        %v1957 = vpop.f32.mrf.mxu0
        %v1958 = vadd.f32 %v1796, %v1957
        %1959 = vmatmul.bf16.gmra.mxu0 %v1902
        %v1960 = vpop.f32.mrf.mxu0
        %v1961 = vadd.f32 %v1799, %v1960
        %v1962 = vpop.f32.mrf.mxu0
        %v1963 = vadd.f32 %v1801, %v1962
        %1964 = vmatmul.bf16.gmra.mxu0 %v1905
        %v1965 = vpop.f32.mrf.mxu0
        %v1966 = vadd.f32 %v1804, %v1965
        %v1967 = vpop.f32.mrf.mxu0
        %v1968 = vadd.f32 %v1806, %v1967
        %1969 = vmatmul.bf16.gmra.mxu0 %v1908
        %v1970 = vpop.f32.mrf.mxu0
        %v1971 = vadd.f32 %v1809, %v1970
        %v1972 = vpop.f32.mrf.mxu0
        %v1973 = vadd.f32 %v1811, %v1972
        %1974 = vmatmul.bf16.gmra.mxu0 %v1911
        %v1975 = vpop.f32.mrf.mxu0
        %v1976 = vadd.f32 %v1814, %v1975
        %v1977 = vpop.f32.mrf.mxu0
        %v1978 = vadd.f32 %v1816, %v1977
        %1979 = vmatmul.bf16.gmra.mxu0 %v1914
        %v1980 = vpop.f32.mrf.mxu0
        %v1981 = vadd.f32 %v1819, %v1980
        %v1982 = vpop.f32.mrf.mxu0
        %v1983 = vadd.f32 %v1821, %v1982
        %1984 = vmatmul.bf16.gmra.mxu0 %v1917
        %v1985 = vpop.f32.mrf.mxu0
        %v1986 = vadd.f32 %v1824, %v1985
        %v1987 = vpop.f32.mrf.mxu0
        %v1988 = vadd.f32 %v1826, %v1987
        %1989 = vmatmul.bf16.gmra.mxu0 %v1920
        %v1990 = vpop.f32.mrf.mxu0
        %v1991 = vadd.f32 %v1829, %v1990
        %v1992 = vpop.f32.mrf.mxu0
        %v1993 = vadd.f32 %v1831, %v1992
        %1994 = vmatmul.bf16.gmra.mxu0 %v1923
        %v1995 = vpop.f32.mrf.mxu0
        %v1996 = vadd.f32 %v1834, %v1995
        %v1997 = vpop.f32.mrf.mxu0
        %v1998 = vadd.f32 %v1836, %v1997
        %1999 = vmatmul.bf16.gmra.mxu0 %v1926
        %v2000 = vpop.f32.mrf.mxu0
        %v2001 = vadd.f32 %v1839, %v2000
        %v2002 = vpop.f32.mrf.mxu0
        %v2003 = vadd.f32 %v1841, %v2002
        %2004 = vmatmul.bf16.gmra.mxu0 %v1929
        %v2005 = vpop.f32.mrf.mxu0
        %v2006 = vadd.f32 %v1844, %v2005
        %v2007 = vpop.f32.mrf.mxu0
        %v2008 = vadd.f32 %v1846, %v2007
        %2009 = vmatmul.bf16.gmra.mxu0 %v1932
        %v2010 = vpop.f32.mrf.mxu0
        %v2011 = vadd.f32 %v1849, %v2010
        %v2012 = vpop.f32.mrf.mxu0
        %v2013 = vadd.f32 %v1851, %v2012
        %2014 = vmatmul.bf16.gmra.mxu0 %v1935
        %v2015 = vpop.f32.mrf.mxu0
        %v2016 = vadd.f32 %v1854, %v2015
        %v2017 = vpop.f32.mrf.mxu0
        %v2018 = vadd.f32 %v1856, %v2017
        %2019 = vmatmul.bf16.gmra.mxu0 %v1938
        %v2020 = vpop.f32.mrf.mxu0
        %v2021 = vadd.f32 %v1859, %v2020
        %v2022 = vpop.f32.mrf.mxu0
        %v2023 = vadd.f32 %v1861, %v2022
        %2024 = vmatmul.bf16.gmra.mxu0 %v1941
        %v2025 = vpop.f32.mrf.mxu0
        %v2026 = vadd.f32 %v1864, %v2025
        %v2027 = vpop.f32.mrf.mxu0
        %v2028 = vadd.f32 %v1866, %v2027
        %2029 = vmatmul.bf16.gmra.mxu0 %v1944
        %v2030 = vpop.f32.mrf.mxu0
        %v2031 = vadd.f32 %v1869, %v2030
        %v2032 = vpop.f32.mrf.mxu0
        %v2033 = vadd.f32 %v1871, %v2032
        %2034 = vdwg.mxu0
        %v2035 = vld [vmem:[%s6] sm:$0x1]
        %v2037 = vperm.slane %v2035, 0
        %v2039 = vadd.f32 %v1956, %v2037
        %v2040 = vadd.f32 %v1958, %v2037
        %v2041 = vadd.f32 %v1961, %v2037
        %v2042 = vadd.f32 %v1963, %v2037
        %v2043 = vadd.f32 %v1966, %v2037
        %v2044 = vadd.f32 %v1968, %v2037
        %v2045 = vadd.f32 %v1971, %v2037
        %v2046 = vadd.f32 %v1973, %v2037
        %v2047 = vadd.f32 %v1976, %v2037
        %v2048 = vadd.f32 %v1978, %v2037
        %v2049 = vadd.f32 %v1981, %v2037
        %v2050 = vadd.f32 %v1983, %v2037
        %v2051 = vadd.f32 %v1986, %v2037
        %v2052 = vadd.f32 %v1988, %v2037
        %v2053 = vadd.f32 %v1991, %v2037
        %v2054 = vadd.f32 %v1993, %v2037
        %v2055 = vadd.f32 %v1996, %v2037
        %v2056 = vadd.f32 %v1998, %v2037
        %v2057 = vadd.f32 %v2001, %v2037
        %v2058 = vadd.f32 %v2003, %v2037
        %v2059 = vadd.f32 %v2006, %v2037
        %v2060 = vadd.f32 %v2008, %v2037
        %v2061 = vadd.f32 %v2011, %v2037
        %v2062 = vadd.f32 %v2013, %v2037
        %v2063 = vadd.f32 %v2016, %v2037
        %v2064 = vadd.f32 %v2018, %v2037
        %v2065 = vadd.f32 %v2021, %v2037
        %v2066 = vadd.f32 %v2023, %v2037
        %v2067 = vadd.f32 %v2026, %v2037
        %v2068 = vadd.f32 %v2028, %v2037
        %v2069 = vadd.f32 %v2031, %v2037
        %v2070 = vadd.f32 %v2033, %v2037
        %v2071 = vmax.f32 %v2039, 0.0
        %v2072 = vmax.f32 %v2040, 0.0
        %v2073 = vmax.f32 %v2041, 0.0
        %v2074 = vmax.f32 %v2042, 0.0
        %v2075 = vmax.f32 %v2043, 0.0
        %v2076 = vmax.f32 %v2044, 0.0
        %v2077 = vmax.f32 %v2045, 0.0
        %v2078 = vmax.f32 %v2046, 0.0
        %v2079 = vmax.f32 %v2047, 0.0
        %v2080 = vmax.f32 %v2048, 0.0
        %v2081 = vmax.f32 %v2049, 0.0
        %v2082 = vmax.f32 %v2050, 0.0
        %v2083 = vmax.f32 %v2051, 0.0
        %v2084 = vmax.f32 %v2052, 0.0
        %v2085 = vmax.f32 %v2053, 0.0
        %v2086 = vmax.f32 %v2054, 0.0
        %v2087 = vmax.f32 %v2055, 0.0
        %v2088 = vmax.f32 %v2056, 0.0
        %v2089 = vmax.f32 %v2057, 0.0
        %v2090 = vmax.f32 %v2058, 0.0
        %v2091 = vmax.f32 %v2059, 0.0
        %v2092 = vmax.f32 %v2060, 0.0
        %v2093 = vmax.f32 %v2061, 0.0
        %v2094 = vmax.f32 %v2062, 0.0
        %v2095 = vmax.f32 %v2063, 0.0
        %v2096 = vmax.f32 %v2064, 0.0
        %v2097 = vmax.f32 %v2065, 0.0
        %v2098 = vmax.f32 %v2066, 0.0
        %v2099 = vmax.f32 %v2067, 0.0
        %v2100 = vmax.f32 %v2068, 0.0
        %v2101 = vmax.f32 %v2069, 0.0
        %v2102 = vmax.f32 %v2070, 0.0
        %v2103 = vld [vmem:[%s7] sm:$0x1]
        %s2104 = sld [smem:[#allocation2]]
        %v2105 = vstv %s2104
        %v2107 = vsel %vm421, %v2103, 0
        %v2110 = vsel %vm421, %v2071, 0
        %v2113 = vsel %vm421, %v2072, 0
        %v2116 = vsel %vm421, %v2073, 0
        %v2119 = vsel %vm421, %v2074, 0
        %v2122 = vsel %vm421, %v2075, 0
        %v2125 = vsel %vm421, %v2076, 0
        %v2128 = vsel %vm421, %v2077, 0
        %v2131 = vsel %vm421, %v2078, 0
        %v2134 = vsel %vm421, %v2079, 0
        %v2137 = vsel %vm421, %v2080, 0
        %v2140 = vsel %vm421, %v2081, 0
        %v2143 = vsel %vm421, %v2082, 0
        %v2146 = vsel %vm421, %v2083, 0
        %v2149 = vsel %vm421, %v2084, 0
        %v2152 = vsel %vm421, %v2085, 0
        %v2155 = vsel %vm421, %v2086, 0
        %v2158 = vsel %vm421, %v2087, 0
        %v2161 = vsel %vm421, %v2088, 0
        %v2164 = vsel %vm421, %v2089, 0
        %v2167 = vsel %vm421, %v2090, 0
        %v2170 = vsel %vm421, %v2091, 0
        %v2173 = vsel %vm421, %v2092, 0
        %v2176 = vsel %vm421, %v2093, 0
        %v2179 = vsel %vm421, %v2094, 0
        %v2182 = vsel %vm421, %v2095, 0
        %v2185 = vsel %vm421, %v2096, 0
        %v2188 = vsel %vm421, %v2097, 0
        %v2191 = vsel %vm421, %v2098, 0
        %v2194 = vsel %vm421, %v2099, 0
        %v2197 = vsel %vm421, %v2100, 0
        %v2200 = vsel %vm421, %v2101, 0
        %v2203 = vsel %vm421, %v2102, 0
        %2205 = vmatpush.xpose.msra.mxu0 %v2155
        %2206 = vmatpush.xpose.msra.mxu0 %v2152
        %2207 = vmatpush.xpose.msra.mxu0 %v2149
        %2208 = vmatpush.xpose.msra.mxu0 %v2146
        %2209 = vmatpush.xpose.msra.mxu0 %v2143
        %2210 = vmatpush.xpose.msra.mxu0 %v2140
        %2211 = vmatpush.xpose.msra.mxu0 %v2137
        %2212 = vmatpush.xpose.msra.mxu0 %v2134
        %2213 = vmatpush.xpose.msra.mxu0 %v2131
        %2214 = vmatpush.xpose.msra.mxu0 %v2128
        %2215 = vmatpush.xpose.msra.mxu0 %v2125
        %2216 = vmatpush.xpose.msra.mxu0 %v2122
        %2217 = vmatpush.xpose.msra.mxu0 %v2119
        %2218 = vmatpush.xpose.msra.mxu0 %v2116
        %2219 = vmatpush.xpose.msra.mxu0 %v2113
        %2220 = vmatpush.xpose.msra.mxu0 %v2110
        %2221 = vmatmul.f32.gmra.mxu0 %v2107
        %v2222 = vpop.f32.mrf.mxu0
        %v2223 = vadd.f32 %v2105, %v2222
        %2224 = vdwg.mxu0
        %2225 = vmatpush.xpose.msra.mxu0 %v2203
        %2226 = vmatpush.xpose.msra.mxu0 %v2200
        %2227 = vmatpush.xpose.msra.mxu0 %v2197
        %2228 = vmatpush.xpose.msra.mxu0 %v2194
        %2229 = vmatpush.xpose.msra.mxu0 %v2191
        %2230 = vmatpush.xpose.msra.mxu0 %v2188
        %2231 = vmatpush.xpose.msra.mxu0 %v2185
        %2232 = vmatpush.xpose.msra.mxu0 %v2182
        %2233 = vmatpush.xpose.msra.mxu0 %v2179
        %2234 = vmatpush.xpose.msra.mxu0 %v2176
        %2235 = vmatpush.xpose.msra.mxu0 %v2173
        %2236 = vmatpush.xpose.msra.mxu0 %v2170
        %2237 = vmatpush.xpose.msra.mxu0 %v2167
        %2238 = vmatpush.xpose.msra.mxu0 %v2164
        %2239 = vmatpush.xpose.msra.mxu0 %v2161
        %2240 = vmatpush.xpose.msra.mxu0 %v2158
        %2241 = vmatmul.f32.gmra.mxu0 %v2107
        %v2242 = vpop.f32.mrf.mxu0
        %v2243 = vadd.f32 %v2105, %v2242
        %2244 = vdwg.mxu0
        %v2247 = vrot.slane %v2243, 7
        %vm2248 = vcmask 1040384
        %v2249 = vsel %vm2248, %v2223, %v2247
        %v2251 = vlaneseq
        %vm2252 = vcmp.ge.s32.totalorder %v2251, 0
        %vm2253 = vcmp.lt.s32.totalorder %v2251, 256
        %vm2254 = vmand %vm2252, %vm2253
        %2255 = vst.msk [vmem:[%s343] sm:$0x3] %vm2254, %v2249
        %s2256 = sand.u32 %s231, 1
        %s2257 = scalar_lea.sflag [#allocation4], %s2256
        %s2258 = sand.u32 %s231, 1
        %s2259 = smul.addr %s2258, 2
        %s2260 = scalar_lea.vmem [#allocation3], %s2259
        // Predicated region
        $region57: #{tpu_custom_call.1} parent=55 // pred_check
          %p2261 = pneg %p241
        $region58: #{tpu_custom_call.1} parent=55 // pred_check_branch
          %2263 = sbr.rel (%p2261) target = $region60
        $region59: #{tpu_custom_call.1} parent=55 // pred_region
          %2265 = vsyncadd %s2257, 0
          %s2266 = smul.addr %s24, 2
          %s2267 = scalar_lea.hbm %s9, %s2266
          %s2269 = sshll.u32 %s2260, 4
          %s2270 = int_to_ptr.vmem [resolvable:$true] %s2269
          %s2271 = sshll.u32 %s2267, 4
          %s2272 = int_to_ptr.hbm [resolvable:$true] %s2271
          %2274 = dma.vmem_to_hbm [thread:$0]  %s2270, 32, %s2272, %s2257
        $region60: #{tpu_custom_call.1} parent=55 // pred_fallthru
          _
      $region56: #{tpu_custom_call.1} parent=5 // pred_fallthru
        _
      %p2275 = scmp.le.s32.totalorder 2, %s19
      // Predicated region
      $region61: #{tpu_custom_call.1} parent=5 // pred_check
        %p2276 = pneg %p2275
      $region62: #{tpu_custom_call.1} parent=5 // pred_check_branch
        %2278 = sbr.rel (%p2276) target = $region64
      $region63: #{tpu_custom_call.1} parent=5 // pred_region
        %s2279 = ssub.s32 %s19, 2
        // Predicated region
        $region65: #{tpu_custom_call.1} parent=63 // pred_check
          %p2280 = pneg %p247
        $region66: #{tpu_custom_call.1} parent=63 // pred_check_branch
          %2282 = sbr.rel (%p2280) target = $region68
        $region67: #{tpu_custom_call.1} parent=63 // pred_region
          %s2283 = sand.u32 %s232, 1
          %s2284 = scalar_lea.sflag [#allocation4], %s2283
          %s2285 = sand.u32 %s232, 1
          %s2286 = smul.addr %s2285, 2
          %s2287 = scalar_lea.vmem [#allocation3], %s2286
          %2289 = dma.done %s2284, 32
        $region68: #{tpu_custom_call.1} parent=63 // pred_fallthru
          _
      $region64: #{tpu_custom_call.1} parent=5 // pred_fallthru
        _
    $region6: #{tpu_custom_call.1} parent=1 // loop_footer
      %s23 = sadd.s32 1, %s19
    $region7: #{tpu_custom_call.1} parent=1 // loop_footer_branch
      %18 = sbr.rel target = $region3
    $region8: #{tpu_custom_call.1} parent=1 // loop_exit
      _
    %2290 = vsyncpa [#allocation4], 1
    %s2291 = scalar_lea.sflag [#allocation4], 1
    %2292 = vsyncpa %s2291, 1

</llo_original>
